<compile_context>
chip_gen: v5e
topology: v5e:2x2
jax: 0.10.0
libtpu: 0.0.40
codegen_flags: <defaults>
</compile_context>

<pallas_src>
import functools

import jax
import jax.numpy as jnp
from jax.experimental import pallas as pl
from jax.experimental.pallas import tpu as pltpu


# ----------------------------- config (small) -----------------------------
VOCAB = 512
HIDDEN = 128
N_LAYERS = 2
N_HEADS = 2
HEAD_DIM = HIDDEN // N_HEADS          # 64
INTERMEDIATE = 256
SEQ = 64                              # matches torch.rand(1, 64).long()
RMS_EPS = 1e-5
ROPE_THETA = 10000.0

_VMEM = pl.BlockSpec(memory_space=pltpu.MemorySpace.VMEM)


# ------------------------------ Pallas kernels -----------------------------
def _rms(x, w):
    var = jnp.mean(x * x, axis=-1, keepdims=True)
    return (x * jax.lax.rsqrt(var + RMS_EPS)) * w


def _decoder_layer_kernel(h_ref, attn_norm_ref, mlp_norm_ref,
                          wqkv_ref, wo_ref, wgu_ref, wd_ref,
                          cos_ref, sin_ref, o_ref):
    """Whole decoder layer, single invocation. All refs live in VMEM.

    h_ref:        (S, H)   f32   residual stream
    attn_norm/mlp_norm: (1, H) f32
    wqkv_ref:     (H, 3H)  bf16  [wq | wk | wv]
    wo_ref:       (H, H)   bf16
    wgu_ref:      (H, 2I)  bf16  [w_gate | w_up]
    wd_ref:       (I, H)   bf16
    cos_ref/sin_ref: (S, Dh) f32 (sin is sign-folded for rotate_half)
    o_ref:        (S, H)   f32
    """
    h = h_ref[...]                                        # (S, H) f32
    seq = h.shape[0]

    # ---------------- self-attention block ----------------
    xn = _rms(h, attn_norm_ref[...]).astype(jnp.bfloat16)
    qkv = jnp.dot(xn, wqkv_ref[...],
                  preferred_element_type=jnp.float32)     # (S, 3H) f32

    cos = cos_ref[...]
    sin = sin_ref[...]                                    # sign-folded
    scale = 1.0 / jnp.sqrt(jnp.float32(HEAD_DIM))

    row = jax.lax.broadcasted_iota(jnp.int32, (seq, seq), 0)
    col = jax.lax.broadcasted_iota(jnp.int32, (seq, seq), 1)
    causal = col <= row

    def rope(x):
        # rotate_half folded into the signed sin table.
        return x * cos + pltpu.roll(x, shift=HEAD_DIM // 2, axis=1) * sin

    attn_out = jnp.zeros_like(h)                          # (S, H) f32
    for hd in range(N_HEADS):                             # static 2-iter loop
        lo = hd * HEAD_DIM
        q = rope(qkv[:, lo:lo + HEAD_DIM])
        k = rope(qkv[:, HIDDEN + lo:HIDDEN + lo + HEAD_DIM])
        v = qkv[:, 2 * HIDDEN + lo:2 * HIDDEN + lo + HEAD_DIM]

        # scores: contract the last dims directly (no k transpose).
        s = jax.lax.dot_general(
            q.astype(jnp.bfloat16), k.astype(jnp.bfloat16),
            (((1,), (1,)), ((), ())),
            preferred_element_type=jnp.float32) * scale   # (S, S)
        s = jnp.where(causal, s, -jnp.inf)

        m = jnp.max(s, axis=-1, keepdims=True)
        p = jnp.exp(s - m)
        p = p * pl.reciprocal(jnp.sum(p, axis=-1, keepdims=True), approx=True)

        o_h = jnp.dot(p.astype(jnp.bfloat16), v.astype(jnp.bfloat16),
                      preferred_element_type=jnp.float32)  # (S, Dh)

        # concat(o_0, o_1) @ wo  ==  sum_h  o_h @ wo[h*Dh:(h+1)*Dh, :]
        attn_out = attn_out + jnp.dot(
            o_h.astype(jnp.bfloat16), wo_ref[lo:lo + HEAD_DIM, :],
            preferred_element_type=jnp.float32)            # (S, H)

    h = h + attn_out                                       # residual (in-kernel)

    # ---------------- MLP block ----------------
    xn = _rms(h, mlp_norm_ref[...]).astype(jnp.bfloat16)
    gu = jnp.dot(xn, wgu_ref[...],
                 preferred_element_type=jnp.float32)       # (S, 2I) f32
    g = gu[:, :INTERMEDIATE]
    u = gu[:, INTERMEDIATE:]
    act = (g * jax.nn.sigmoid(g)) * u                      # SwiGLU
    h = h + jnp.dot(act.astype(jnp.bfloat16), wd_ref[...],
                    preferred_element_type=jnp.float32)    # residual

    o_ref[...] = h


def decoder_layer(h, layer, cos, sin_signed):
    return pl.pallas_call(
        _decoder_layer_kernel,
        out_shape=jax.ShapeDtypeStruct(h.shape, jnp.float32),
        in_specs=[_VMEM] * 9,
        out_specs=_VMEM,
    )(h, layer["attn_norm"], layer["mlp_norm"],
      layer["wqkv"], layer["wo"], layer["wgu"], layer["wd"],
      cos, sin_signed)


def _rmsnorm_kernel(x_ref, w_ref, o_ref):
    o_ref[...] = _rms(x_ref[...], w_ref[...])


def rmsnorm(x, w):
    """x: (S, H) f32, w: (1, H) f32."""
    return pl.pallas_call(
        _rmsnorm_kernel,
        out_shape=jax.ShapeDtypeStruct(x.shape, jnp.float32),
        in_specs=[_VMEM, _VMEM],
        out_specs=_VMEM,
    )(x, w)


# ------------------------------ parameters ---------------------------------
def init_params(key):
    def dense(k, shape, scale=0.02):
        return (scale * jax.random.normal(k, shape)).astype(jnp.bfloat16)

    keys = jax.random.split(key, 2 + N_LAYERS)
    params = {
        "embed": (0.02 * jax.random.normal(keys[0], (VOCAB, HIDDEN))
                  ).astype(jnp.float32),
        "final_norm": jnp.ones((1, HIDDEN), jnp.float32),
        "layers": [],
    }
    for li in range(N_LAYERS):
        lk = jax.random.split(keys[2 + li], 8)
        wq = dense(lk[0], (HIDDEN, HIDDEN))
        wk = dense(lk[1], (HIDDEN, HIDDEN))
        wv = dense(lk[2], (HIDDEN, HIDDEN))
        wg = dense(lk[4], (HIDDEN, INTERMEDIATE))
        wu = dense(lk[5], (HIDDEN, INTERMEDIATE))
        params["layers"].append({
            "attn_norm": jnp.ones((1, HIDDEN), jnp.float32),
            "wqkv": jnp.concatenate([wq, wk, wv], axis=1),       # (H, 3H) bf16
            "wo": dense(lk[3], (HIDDEN, HIDDEN)),                # (H, H)  bf16
            "mlp_norm": jnp.ones((1, HIDDEN), jnp.float32),
            "wgu": jnp.concatenate([wg, wu], axis=1),            # (H, 2I) bf16
            "wd": dense(lk[6], (INTERMEDIATE, HIDDEN)),          # (I, H)  bf16
        })
    return params


def rope_tables(seq, dim, theta=ROPE_THETA):
    inv_freq = 1.0 / (theta ** (jnp.arange(0, dim, 2, dtype=jnp.float32) / dim))
    pos = jnp.arange(seq, dtype=jnp.float32)
    freqs = jnp.outer(pos, inv_freq)                 # (S, Dh/2)
    emb = jnp.concatenate([freqs, freqs], axis=-1)   # (S, Dh)
    cos = jnp.cos(emb)
    sin = jnp.sin(emb)
    # sign-fold rotate_half: roll(x, d/2) needs (-1) on the first half lanes.
    sin_signed = jnp.concatenate([-sin[:, :dim // 2], sin[:, dim // 2:]], axis=-1)
    return cos, sin_signed


# ------------------------------ forward pass --------------------------------
@functools.partial(jax.jit, static_argnums=())
def llama_decoder_forward(params, input_ids):
    """input_ids: (1, SEQ) int32. Returns (last_hidden, tuple_of_hidden_states)
    mimicking LlamaModel(..., output_hidden_states=True)."""
    ids = input_ids[0]                               # batch=1 squeezed
    # TODO(synk): embedding gather kept in plain JAX (data-dependent row gather).
    h = jnp.take(params["embed"], ids, axis=0)       # (S, H) f32

    cos, sin_signed = rope_tables(SEQ, HEAD_DIM)
    hidden_states = [h[None]]                        # (1, S, H) per HF convention

    for li, layer in enumerate(params["layers"]):
        h = decoder_layer(h, layer, cos, sin_signed)  # fused layer kernel
        if li < N_LAYERS - 1:
            hidden_states.append(h[None])

    last_hidden = rmsnorm(h, params["final_norm"])[None]   # (1, S, H)
    hidden_states.append(last_hidden)                # HF: last entry is normed
    return last_hidden, tuple(hidden_states)


# --------------------------------- main -------------------------------------
if __name__ == "__main__":
    key = jax.random.PRNGKey(0)
    pkey, ikey = jax.random.split(key)
    params = init_params(pkey)

    # analogue of: x = torch.rand(1, 64).long()  -> token ids in [0, VOCAB)
    input_ids = jax.random.randint(ikey, (1, SEQ), 0, VOCAB, dtype=jnp.int32)

    last_hidden, all_hidden = llama_decoder_forward(params, input_ids)
    jax.block_until_ready(last_hidden)

    assert last_hidden.shape == (1, SEQ, HIDDEN)
    assert len(all_hidden) == N_LAYERS + 1
    assert all(hs.shape == (1, SEQ, HIDDEN) for hs in all_hidden)
    assert jnp.all(jnp.isfinite(last_hidden))
    print("KERNEL_OK")
</pallas_src>

<mosaic_0001>
module attributes {stable_mosaic.version = 11 : i64} {
  func.func @_decoder_layer_kernel(%arg0: memref<64x128xf32, #tpu.memory_space<vmem>>, %arg1: memref<1x128xf32, #tpu.memory_space<vmem>>, %arg2: memref<1x128xf32, #tpu.memory_space<vmem>>, %arg3: memref<128x384xbf16, #tpu.memory_space<vmem>>, %arg4: memref<128x128xbf16, #tpu.memory_space<vmem>>, %arg5: memref<128x512xbf16, #tpu.memory_space<vmem>>, %arg6: memref<256x128xbf16, #tpu.memory_space<vmem>>, %arg7: memref<64x64xf32, #tpu.memory_space<vmem>>, %arg8: memref<64x64xf32, #tpu.memory_space<vmem>>, %arg9: memref<64x128xf32, #tpu.memory_space<vmem>>) attributes {dimension_semantics = [], scalar_prefetch = 0 : i64, scratch_operands = 0 : i64, tpu.core_type = #tpu.core_type<tc>} {
    %c0 = arith.constant 0 : index
    %c0_0 = arith.constant 0 : index
    %0 = vector.load %arg0[%c0, %c0_0] : memref<64x128xf32, #tpu.memory_space<vmem>>, vector<64x128xf32>
    %c0_1 = arith.constant 0 : index
    %c0_2 = arith.constant 0 : index
    %1 = vector.load %arg1[%c0_1, %c0_2] : memref<1x128xf32, #tpu.memory_space<vmem>>, vector<1x128xf32>
    %2 = arith.mulf %0, %0 : vector<64x128xf32>
    %cst = arith.constant dense<0.000000e+00> : vector<64xf32>
    %3 = vector.multi_reduction <add>, %2, %cst [1] : vector<64x128xf32> to vector<64xf32>
    %4 = vector.shape_cast %3 : vector<64xf32> to vector<64x1xf32>
    %cst_3 = arith.constant 1.280000e+02 : f32
    %5 = vector.broadcast %cst_3 : f32 to vector<64x1xf32>
    %6 = arith.divf %4, %5 : vector<64x1xf32>
    %cst_4 = arith.constant 9.99999974E-6 : f32
    %7 = vector.broadcast %cst_4 : f32 to vector<64x1xf32>
    %8 = arith.addf %6, %7 : vector<64x1xf32>
    %9 = math.rsqrt %8 : vector<64x1xf32>
    %10 = vector.broadcast %9 : vector<64x1xf32> to vector<64x128xf32>
    %11 = arith.mulf %0, %10 : vector<64x128xf32>
    %12 = vector.broadcast %1 : vector<1x128xf32> to vector<64x128xf32>
    %13 = arith.mulf %11, %12 : vector<64x128xf32>
    %14 = arith.truncf %13 : vector<64x128xf32> to vector<64x128xbf16>
    %c0_5 = arith.constant 0 : index
    %c0_6 = arith.constant 0 : index
    %15 = vector.load %arg3[%c0_5, %c0_6] : memref<128x384xbf16, #tpu.memory_space<vmem>>, vector<128x384xbf16>
    %cst_7 = arith.constant dense<0.000000e+00> : vector<64x384xf32>
    %16 = tpu.matmul %14, %15, %cst_7 {dimension_numbers = #tpu.dot_dimension_numbers<[1], [0], [0], [1], [0, 0, 1, 1], [], []>} : vector<64x128xbf16>, vector<128x384xbf16>, vector<64x384xf32> -> vector<64x384xf32>
    %c0_8 = arith.constant 0 : index
    %c0_9 = arith.constant 0 : index
    %17 = vector.load %arg7[%c0_8, %c0_9] : memref<64x64xf32, #tpu.memory_space<vmem>>, vector<64x64xf32>
    %c0_10 = arith.constant 0 : index
    %c0_11 = arith.constant 0 : index
    %18 = vector.load %arg8[%c0_10, %c0_11] : memref<64x64xf32, #tpu.memory_space<vmem>>, vector<64x64xf32>
    %cst_12 = arith.constant 6.400000e+01 : f32
    %19 = math.sqrt %cst_12 : f32
    %cst_13 = arith.constant 1.000000e+00 : f32
    %20 = arith.divf %cst_13, %19 : f32
    %21 = tpu.iota {dimensions = array<i32: 0>} : vector<64x64xi32>
    %22 = tpu.iota {dimensions = array<i32: 1>} : vector<64x64xi32>
    %23 = arith.cmpi sle, %22, %21 : vector<64x64xi32>
    %cst_14 = arith.constant 0.000000e+00 : f32
    %24 = vector.broadcast %cst_14 : f32 to vector<64x128xf32>
    %25 = vector.extract_strided_slice %16 {offsets = [0, 0], sizes = [64, 64], strides = [1, 1]} : vector<64x384xf32> to vector<64x64xf32>
    %26 = arith.mulf %25, %17 : vector<64x64xf32>
    %c32_i32 = arith.constant 32 : i32
    %27 = tpu.dynamic_rotate %25 by %c32_i32 dim 1 : vector<64x64xf32>, i32 -> vector<64x64xf32>
    %28 = arith.mulf %27, %18 : vector<64x64xf32>
    %29 = arith.addf %26, %28 : vector<64x64xf32>
    %30 = vector.extract_strided_slice %16 {offsets = [0, 128], sizes = [64, 64], strides = [1, 1]} : vector<64x384xf32> to vector<64x64xf32>
    %31 = arith.mulf %30, %17 : vector<64x64xf32>
    %c32_i32_15 = arith.constant 32 : i32
    %32 = tpu.dynamic_rotate %30 by %c32_i32_15 dim 1 : vector<64x64xf32>, i32 -> vector<64x64xf32>
    %33 = arith.mulf %32, %18 : vector<64x64xf32>
    %34 = arith.addf %31, %33 : vector<64x64xf32>
    %35 = vector.extract_strided_slice %16 {offsets = [0, 256], sizes = [64, 64], strides = [1, 1]} : vector<64x384xf32> to vector<64x64xf32>
    %36 = arith.truncf %29 : vector<64x64xf32> to vector<64x64xbf16>
    %37 = arith.truncf %34 : vector<64x64xf32> to vector<64x64xbf16>
    %cst_16 = arith.constant dense<0.000000e+00> : vector<64x64xf32>
    %38 = tpu.matmul %36, %37, %cst_16 {dimension_numbers = #tpu.dot_dimension_numbers<[1], [1], [0], [0], [0, 0, 1, 0], [], []>} : vector<64x64xbf16>, vector<64x64xbf16>, vector<64x64xf32> -> vector<64x64xf32>
    %39 = vector.broadcast %20 : f32 to vector<64x64xf32>
    %40 = arith.mulf %38, %39 : vector<64x64xf32>
    %cst_17 = arith.constant 0xFF800000 : f32
    %41 = vector.broadcast %cst_17 : f32 to vector<64x64xf32>
    %42 = arith.select %23, %40, %41 : vector<64x64xi1>, vector<64x64xf32>
    %cst_18 = arith.constant dense<0xFF800000> : vector<64xf32>
    %43 = vector.multi_reduction <maximumf>, %42, %cst_18 [1] : vector<64x64xf32> to vector<64xf32>
    %44 = vector.shape_cast %43 : vector<64xf32> to vector<64x1xf32>
    %45 = vector.broadcast %44 : vector<64x1xf32> to vector<64x64xf32>
    %46 = arith.subf %42, %45 : vector<64x64xf32>
    %47 = math.exp %46 : vector<64x64xf32>
    %cst_19 = arith.constant dense<0.000000e+00> : vector<64xf32>
    %48 = vector.multi_reduction <add>, %47, %cst_19 [1] : vector<64x64xf32> to vector<64xf32>
    %49 = vector.shape_cast %48 : vector<64xf32> to vector<64x1xf32>
    %50 = tpu.reciprocal %49 {approx = true} : vector<64x1xf32> -> vector<64x1xf32>
    %51 = vector.broadcast %50 : vector<64x1xf32> to vector<64x64xf32>
    %52 = arith.mulf %47, %51 : vector<64x64xf32>
    %53 = arith.truncf %52 : vector<64x64xf32> to vector<64x64xbf16>
    %54 = arith.truncf %35 : vector<64x64xf32> to vector<64x64xbf16>
    %cst_20 = arith.constant dense<0.000000e+00> : vector<64x64xf32>
    %55 = tpu.matmul %53, %54, %cst_20 {dimension_numbers = #tpu.dot_dimension_numbers<[1], [0], [0], [1], [0, 0, 1, 1], [], []>} : vector<64x64xbf16>, vector<64x64xbf16>, vector<64x64xf32> -> vector<64x64xf32>
    %56 = arith.truncf %55 : vector<64x64xf32> to vector<64x64xbf16>
    %c0_21 = arith.constant 0 : index
    %c0_22 = arith.constant 0 : index
    %57 = vector.load %arg4[%c0_21, %c0_22] : memref<128x128xbf16, #tpu.memory_space<vmem>>, vector<64x128xbf16>
    %cst_23 = arith.constant dense<0.000000e+00> : vector<64x128xf32>
    %58 = tpu.matmul %56, %57, %cst_23 {dimension_numbers = #tpu.dot_dimension_numbers<[1], [0], [0], [1], [0, 0, 1, 1], [], []>} : vector<64x64xbf16>, vector<64x128xbf16>, vector<64x128xf32> -> vector<64x128xf32>
    %59 = arith.addf %24, %58 : vector<64x128xf32>
    %60 = vector.extract_strided_slice %16 {offsets = [0, 64], sizes = [64, 64], strides = [1, 1]} : vector<64x384xf32> to vector<64x64xf32>
    %61 = arith.mulf %60, %17 : vector<64x64xf32>
    %c32_i32_24 = arith.constant 32 : i32
    %62 = tpu.dynamic_rotate %60 by %c32_i32_24 dim 1 : vector<64x64xf32>, i32 -> vector<64x64xf32>
    %63 = arith.mulf %62, %18 : vector<64x64xf32>
    %64 = arith.addf %61, %63 : vector<64x64xf32>
    %65 = vector.extract_strided_slice %16 {offsets = [0, 192], sizes = [64, 64], strides = [1, 1]} : vector<64x384xf32> to vector<64x64xf32>
    %66 = arith.mulf %65, %17 : vector<64x64xf32>
    %c32_i32_25 = arith.constant 32 : i32
    %67 = tpu.dynamic_rotate %65 by %c32_i32_25 dim 1 : vector<64x64xf32>, i32 -> vector<64x64xf32>
    %68 = arith.mulf %67, %18 : vector<64x64xf32>
    %69 = arith.addf %66, %68 : vector<64x64xf32>
    %70 = vector.extract_strided_slice %16 {offsets = [0, 320], sizes = [64, 64], strides = [1, 1]} : vector<64x384xf32> to vector<64x64xf32>
    %71 = arith.truncf %64 : vector<64x64xf32> to vector<64x64xbf16>
    %72 = arith.truncf %69 : vector<64x64xf32> to vector<64x64xbf16>
    %cst_26 = arith.constant dense<0.000000e+00> : vector<64x64xf32>
    %73 = tpu.matmul %71, %72, %cst_26 {dimension_numbers = #tpu.dot_dimension_numbers<[1], [1], [0], [0], [0, 0, 1, 0], [], []>} : vector<64x64xbf16>, vector<64x64xbf16>, vector<64x64xf32> -> vector<64x64xf32>
    %74 = vector.broadcast %20 : f32 to vector<64x64xf32>
    %75 = arith.mulf %73, %74 : vector<64x64xf32>
    %cst_27 = arith.constant 0xFF800000 : f32
    %76 = vector.broadcast %cst_27 : f32 to vector<64x64xf32>
    %77 = arith.select %23, %75, %76 : vector<64x64xi1>, vector<64x64xf32>
    %cst_28 = arith.constant dense<0xFF800000> : vector<64xf32>
    %78 = vector.multi_reduction <maximumf>, %77, %cst_28 [1] : vector<64x64xf32> to vector<64xf32>
    %79 = vector.shape_cast %78 : vector<64xf32> to vector<64x1xf32>
    %80 = vector.broadcast %79 : vector<64x1xf32> to vector<64x64xf32>
    %81 = arith.subf %77, %80 : vector<64x64xf32>
    %82 = math.exp %81 : vector<64x64xf32>
    %cst_29 = arith.constant dense<0.000000e+00> : vector<64xf32>
    %83 = vector.multi_reduction <add>, %82, %cst_29 [1] : vector<64x64xf32> to vector<64xf32>
    %84 = vector.shape_cast %83 : vector<64xf32> to vector<64x1xf32>
    %85 = tpu.reciprocal %84 {approx = true} : vector<64x1xf32> -> vector<64x1xf32>
    %86 = vector.broadcast %85 : vector<64x1xf32> to vector<64x64xf32>
    %87 = arith.mulf %82, %86 : vector<64x64xf32>
    %88 = arith.truncf %87 : vector<64x64xf32> to vector<64x64xbf16>
    %89 = arith.truncf %70 : vector<64x64xf32> to vector<64x64xbf16>
    %cst_30 = arith.constant dense<0.000000e+00> : vector<64x64xf32>
    %90 = tpu.matmul %88, %89, %cst_30 {dimension_numbers = #tpu.dot_dimension_numbers<[1], [0], [0], [1], [0, 0, 1, 1], [], []>} : vector<64x64xbf16>, vector<64x64xbf16>, vector<64x64xf32> -> vector<64x64xf32>
    %91 = arith.truncf %90 : vector<64x64xf32> to vector<64x64xbf16>
    %c64 = arith.constant 64 : index
    %c0_31 = arith.constant 0 : index
    %92 = vector.load %arg4[%c64, %c0_31] : memref<128x128xbf16, #tpu.memory_space<vmem>>, vector<64x128xbf16>
    %cst_32 = arith.constant dense<0.000000e+00> : vector<64x128xf32>
    %93 = tpu.matmul %91, %92, %cst_32 {dimension_numbers = #tpu.dot_dimension_numbers<[1], [0], [0], [1], [0, 0, 1, 1], [], []>} : vector<64x64xbf16>, vector<64x128xbf16>, vector<64x128xf32> -> vector<64x128xf32>
    %94 = arith.addf %59, %93 : vector<64x128xf32>
    %95 = arith.addf %0, %94 : vector<64x128xf32>
    %c0_33 = arith.constant 0 : index
    %c0_34 = arith.constant 0 : index
    %96 = vector.load %arg2[%c0_33, %c0_34] : memref<1x128xf32, #tpu.memory_space<vmem>>, vector<1x128xf32>
    %97 = arith.mulf %95, %95 : vector<64x128xf32>
    %cst_35 = arith.constant dense<0.000000e+00> : vector<64xf32>
    %98 = vector.multi_reduction <add>, %97, %cst_35 [1] : vector<64x128xf32> to vector<64xf32>
    %99 = vector.shape_cast %98 : vector<64xf32> to vector<64x1xf32>
    %cst_36 = arith.constant 1.280000e+02 : f32
    %100 = vector.broadcast %cst_36 : f32 to vector<64x1xf32>
    %101 = arith.divf %99, %100 : vector<64x1xf32>
    %cst_37 = arith.constant 9.99999974E-6 : f32
    %102 = vector.broadcast %cst_37 : f32 to vector<64x1xf32>
    %103 = arith.addf %101, %102 : vector<64x1xf32>
    %104 = math.rsqrt %103 : vector<64x1xf32>
    %105 = vector.broadcast %104 : vector<64x1xf32> to vector<64x128xf32>
    %106 = arith.mulf %95, %105 : vector<64x128xf32>
    %107 = vector.broadcast %96 : vector<1x128xf32> to vector<64x128xf32>
    %108 = arith.mulf %106, %107 : vector<64x128xf32>
    %109 = arith.truncf %108 : vector<64x128xf32> to vector<64x128xbf16>
    %c0_38 = arith.constant 0 : index
    %c0_39 = arith.constant 0 : index
    %110 = vector.load %arg5[%c0_38, %c0_39] : memref<128x512xbf16, #tpu.memory_space<vmem>>, vector<128x512xbf16>
    %cst_40 = arith.constant dense<0.000000e+00> : vector<64x512xf32>
    %111 = tpu.matmul %109, %110, %cst_40 {dimension_numbers = #tpu.dot_dimension_numbers<[1], [0], [0], [1], [0, 0, 1, 1], [], []>} : vector<64x128xbf16>, vector<128x512xbf16>, vector<64x512xf32> -> vector<64x512xf32>
    %112 = vector.extract_strided_slice %111 {offsets = [0, 0], sizes = [64, 256], strides = [1, 1]} : vector<64x512xf32> to vector<64x256xf32>
    %113 = vector.extract_strided_slice %111 {offsets = [0, 256], sizes = [64, 256], strides = [1, 1]} : vector<64x512xf32> to vector<64x256xf32>
    %114 = arith.negf %112 : vector<64x256xf32>
    %115 = math.exp %114 : vector<64x256xf32>
    %cst_41 = arith.constant 1.000000e+00 : f32
    %116 = vector.broadcast %cst_41 : f32 to vector<64x256xf32>
    %117 = arith.addf %116, %115 : vector<64x256xf32>
    %118 = arith.divf %116, %117 : vector<64x256xf32>
    %119 = arith.mulf %112, %118 : vector<64x256xf32>
    %120 = arith.mulf %119, %113 : vector<64x256xf32>
    %121 = arith.truncf %120 : vector<64x256xf32> to vector<64x256xbf16>
    %c0_42 = arith.constant 0 : index
    %c0_43 = arith.constant 0 : index
    %122 = vector.load %arg6[%c0_42, %c0_43] : memref<256x128xbf16, #tpu.memory_space<vmem>>, vector<256x128xbf16>
    %cst_44 = arith.constant dense<0.000000e+00> : vector<64x128xf32>
    %123 = tpu.matmul %121, %122, %cst_44 {dimension_numbers = #tpu.dot_dimension_numbers<[1], [0], [0], [1], [0, 0, 1, 1], [], []>} : vector<64x256xbf16>, vector<256x128xbf16>, vector<64x128xf32> -> vector<64x128xf32>
    %124 = arith.addf %95, %123 : vector<64x128xf32>
    %c0_45 = arith.constant 0 : index
    %c0_46 = arith.constant 0 : index
    %125 = vector.load %arg9[%c0_45, %c0_46] : memref<64x128xf32, #tpu.memory_space<vmem>>, vector<64x128xf32>
    tpu.vector_store %arg9[%c0_45, %c0_46], %124 {strides = array<i32>} : memref<64x128xf32, #tpu.memory_space<vmem>>, vector<64x128xf32>,
    return
  }
}

module attributes {stable_mosaic.version = 11 : i64} {
  func.func @_rmsnorm_kernel(%arg0: memref<64x128xf32, #tpu.memory_space<vmem>>, %arg1: memref<1x128xf32, #tpu.memory_space<vmem>>, %arg2: memref<64x128xf32, #tpu.memory_space<vmem>>) attributes {dimension_semantics = [], scalar_prefetch = 0 : i64, scratch_operands = 0 : i64, tpu.core_type = #tpu.core_type<tc>} {
    %c0 = arith.constant 0 : index
    %c0_0 = arith.constant 0 : index
    %0 = vector.load %arg0[%c0, %c0_0] : memref<64x128xf32, #tpu.memory_space<vmem>>, vector<64x128xf32>
    %c0_1 = arith.constant 0 : index
    %c0_2 = arith.constant 0 : index
    %1 = vector.load %arg1[%c0_1, %c0_2] : memref<1x128xf32, #tpu.memory_space<vmem>>, vector<1x128xf32>
    %2 = arith.mulf %0, %0 : vector<64x128xf32>
    %cst = arith.constant dense<0.000000e+00> : vector<64xf32>
    %3 = vector.multi_reduction <add>, %2, %cst [1] : vector<64x128xf32> to vector<64xf32>
    %4 = vector.shape_cast %3 : vector<64xf32> to vector<64x1xf32>
    %cst_3 = arith.constant 1.280000e+02 : f32
    %5 = vector.broadcast %cst_3 : f32 to vector<64x1xf32>
    %6 = arith.divf %4, %5 : vector<64x1xf32>
    %cst_4 = arith.constant 9.99999974E-6 : f32
    %7 = vector.broadcast %cst_4 : f32 to vector<64x1xf32>
    %8 = arith.addf %6, %7 : vector<64x1xf32>
    %9 = math.rsqrt %8 : vector<64x1xf32>
    %10 = vector.broadcast %9 : vector<64x1xf32> to vector<64x128xf32>
    %11 = arith.mulf %0, %10 : vector<64x128xf32>
    %12 = vector.broadcast %1 : vector<1x128xf32> to vector<64x128xf32>
    %13 = arith.mulf %11, %12 : vector<64x128xf32>
    %c0_5 = arith.constant 0 : index
    %c0_6 = arith.constant 0 : index
    %14 = vector.load %arg2[%c0_5, %c0_6] : memref<64x128xf32, #tpu.memory_space<vmem>>, vector<64x128xf32>
    tpu.vector_store %arg2[%c0_5, %c0_6], %13 {strides = array<i32>} : memref<64x128xf32, #tpu.memory_space<vmem>>, vector<64x128xf32>,
    return
  }
}

</mosaic_0001>

<llo_original>
// kernel: llama_decoder_forward.5
$region0: #{llama_decoder_forward.5}
  #allocation0 [shape = 'u32[]', space=smem, size = 0x4, offset = 0x4, fixed_abs, tag = 'smem constant byte address 0x4 - core index']
  #allocation1 [shape = 'u32[72,128]{1,0:T(1,128)}', space=vmem, size = 0x9000, scoped, tag = 'internal scratch']
  %s0 = inlined_call_operand.vmem [shape: f32[64,128], index: 0, kind: input, shape index: {}]
  %s1 = inlined_call_operand.vmem [shape: f32[1,128], index: 1, kind: input, shape index: {}]
  %s2 = inlined_call_operand.vmem [shape: f32[64,128], index: 2, kind: output, shape index: {}]
  %s3 = sld [smem:[#allocation0]]
  $region18: #{llama_decoder_forward.5} parent=0
    _
  %s5 = ssub.s32 1, %s3
  %s6 = scalar_select 0, %s5, %s3
  // Predicated region
  $region2: #{llama_decoder_forward.5} parent=0 // pred_check
    _
  $region3: #{llama_decoder_forward.5} parent=0 // pred_check_branch
    %8 = sbr.rel (0) target = $region5
  $region4: #{llama_decoder_forward.5} parent=0 // pred_region
    _
  $region5: #{llama_decoder_forward.5} parent=0 // pred_fallthru
    _
  // Predicated region
  $region6: #{llama_decoder_forward.5} parent=0 // pred_check
    _
  $region7: #{llama_decoder_forward.5} parent=0 // pred_check_branch
    %10 = sbr.rel (0) target = $region9
  $region8: #{llama_decoder_forward.5} parent=0 // pred_region
    _
  $region9: #{llama_decoder_forward.5} parent=0 // pred_fallthru
    _
  %v11 = vld [vmem:[%s0] sm:$0xff]
  %v12 = vld [vmem:[%s0 + $0x8] sm:$0xff]
  %v13 = vld [vmem:[%s0 + $0x10] sm:$0xff]
  %v14 = vld [vmem:[%s0 + $0x18] sm:$0xff]
  %v15 = vld [vmem:[%s0 + $0x20] sm:$0xff]
  %v16 = vld [vmem:[%s0 + $0x28] sm:$0xff]
  %v17 = vld [vmem:[%s0 + $0x30] sm:$0xff]
  %v18 = vld [vmem:[%s0 + $0x38] sm:$0xff]
  %v19 = vld [vmem:[%s1] sm:$0x1]
  %v20 = vmul.f32 %v11, %v11
  %v21 = vmul.f32 %v12, %v12
  %v22 = vmul.f32 %v13, %v13
  %v23 = vmul.f32 %v14, %v14
  %v24 = vmul.f32 %v15, %v15
  %v25 = vmul.f32 %v16, %v16
  %v26 = vmul.f32 %v17, %v17
  %v27 = vmul.f32 %v18, %v18
  %28 = vadd.xlane.f32.xlu0 %v20
  %v29 = vpop.xlane.xlu0 %28
  %30 = vadd.xlane.f32.xlu0 %v21
  %v31 = vpop.xlane.xlu0 %30
  %32 = vadd.xlane.f32.xlu0 %v22
  %v33 = vpop.xlane.xlu0 %32
  %34 = vadd.xlane.f32.xlu0 %v23
  %v35 = vpop.xlane.xlu0 %34
  %36 = vadd.xlane.f32.xlu0 %v24
  %v37 = vpop.xlane.xlu0 %36
  %38 = vadd.xlane.f32.xlu0 %v25
  %v39 = vpop.xlane.xlu0 %38
  %40 = vadd.xlane.f32.xlu0 %v26
  %v41 = vpop.xlane.xlu0 %40
  %42 = vadd.xlane.f32.xlu0 %v27
  %v43 = vpop.xlane.xlu0 %42
  %v44 = vrcp.pop 128.0
  %v45 = vmul.f32 128.0, %v44
  %v46 = vsub.f32 1.0, %v45
  %v47 = vmul.f32 %v44, %v46
  %v48 = vadd.f32 %v44, %v47
  %vm49 = vweird.f32 %v44
  %v50 = vsel %vm49, %v44, %v48
  %v51 = vmul.f32 %v29, %v50
  %v52 = vmul.f32 %v31, %v50
  %v53 = vmul.f32 %v33, %v50
  %v54 = vmul.f32 %v35, %v50
  %v55 = vmul.f32 %v37, %v50
  %v56 = vmul.f32 %v39, %v50
  %v57 = vmul.f32 %v41, %v50
  %v58 = vmul.f32 %v43, %v50
  %v59 = vadd.f32 %v51, 1e-05
  %v60 = vadd.f32 %v52, 1e-05
  %v61 = vadd.f32 %v53, 1e-05
  %v62 = vadd.f32 %v54, 1e-05
  %v63 = vadd.f32 %v55, 1e-05
  %v64 = vadd.f32 %v56, 1e-05
  %v65 = vadd.f32 %v57, 1e-05
  %v66 = vadd.f32 %v58, 1e-05
  %v67 = vrsqrt.pop %v59
  %v68 = vmul.f32 %v67, %v59
  %v69 = vmul.f32 %v68, %v67
  %v70 = vmul.f32 0.5, %v69
  %v71 = vsub.f32 1.5, %v70
  %v72 = vmul.f32 %v67, %v71
  %vm73 = vweird.f32 %v59
  %vm74 = vweird.f32 %v67
  %vm75 = vmor %vm73, %vm74
  %v76 = vsel %vm75, %v67, %v72
  %v77 = vrsqrt.pop %v60
  %v78 = vmul.f32 %v77, %v60
  %v79 = vmul.f32 %v78, %v77
  %v80 = vmul.f32 0.5, %v79
  %v81 = vsub.f32 1.5, %v80
  %v82 = vmul.f32 %v77, %v81
  %vm83 = vweird.f32 %v60
  %vm84 = vweird.f32 %v77
  %vm85 = vmor %vm83, %vm84
  %v86 = vsel %vm85, %v77, %v82
  %v87 = vrsqrt.pop %v61
  %v88 = vmul.f32 %v87, %v61
  %v89 = vmul.f32 %v88, %v87
  %v90 = vmul.f32 0.5, %v89
  %v91 = vsub.f32 1.5, %v90
  %v92 = vmul.f32 %v87, %v91
  %vm93 = vweird.f32 %v61
  %vm94 = vweird.f32 %v87
  %vm95 = vmor %vm93, %vm94
  %v96 = vsel %vm95, %v87, %v92
  %v97 = vrsqrt.pop %v62
  %v98 = vmul.f32 %v97, %v62
  %v99 = vmul.f32 %v98, %v97
  %v100 = vmul.f32 0.5, %v99
  %v101 = vsub.f32 1.5, %v100
  %v102 = vmul.f32 %v97, %v101
  %vm103 = vweird.f32 %v62
  %vm104 = vweird.f32 %v97
  %vm105 = vmor %vm103, %vm104
  %v106 = vsel %vm105, %v97, %v102
  %v107 = vrsqrt.pop %v63
  %v108 = vmul.f32 %v107, %v63
  %v109 = vmul.f32 %v108, %v107
  %v110 = vmul.f32 0.5, %v109
  %v111 = vsub.f32 1.5, %v110
  %v112 = vmul.f32 %v107, %v111
  %vm113 = vweird.f32 %v63
  %vm114 = vweird.f32 %v107
  %vm115 = vmor %vm113, %vm114
  %v116 = vsel %vm115, %v107, %v112
  %v117 = vrsqrt.pop %v64
  %v118 = vmul.f32 %v117, %v64
  %v119 = vmul.f32 %v118, %v117
  %v120 = vmul.f32 0.5, %v119
  %v121 = vsub.f32 1.5, %v120
  %v122 = vmul.f32 %v117, %v121
  %vm123 = vweird.f32 %v64
  %vm124 = vweird.f32 %v117
  %vm125 = vmor %vm123, %vm124
  %v126 = vsel %vm125, %v117, %v122
  %v127 = vrsqrt.pop %v65
  %v128 = vmul.f32 %v127, %v65
  %v129 = vmul.f32 %v128, %v127
  %v130 = vmul.f32 0.5, %v129
  %v131 = vsub.f32 1.5, %v130
  %v132 = vmul.f32 %v127, %v131
  %vm133 = vweird.f32 %v65
  %vm134 = vweird.f32 %v127
  %vm135 = vmor %vm133, %vm134
  %v136 = vsel %vm135, %v127, %v132
  %v137 = vrsqrt.pop %v66
  %v138 = vmul.f32 %v137, %v66
  %v139 = vmul.f32 %v138, %v137
  %v140 = vmul.f32 0.5, %v139
  %v141 = vsub.f32 1.5, %v140
  %v142 = vmul.f32 %v137, %v141
  %vm143 = vweird.f32 %v66
  %vm144 = vweird.f32 %v137
  %vm145 = vmor %vm143, %vm144
  %v146 = vsel %vm145, %v137, %v142
  %v147 = vmul.f32 %v11, %v76
  %v148 = vmul.f32 %v12, %v86
  %v149 = vmul.f32 %v13, %v96
  %v150 = vmul.f32 %v14, %v106
  %v151 = vmul.f32 %v15, %v116
  %v152 = vmul.f32 %v16, %v126
  %v153 = vmul.f32 %v17, %v136
  %v154 = vmul.f32 %v18, %v146
  %v156 = vperm.slane %v19, 0
  %v158 = vmul.f32 %v147, %v156
  %v159 = vmul.f32 %v148, %v156
  %v160 = vmul.f32 %v149, %v156
  %v161 = vmul.f32 %v150, %v156
  %v162 = vmul.f32 %v151, %v156
  %v163 = vmul.f32 %v152, %v156
  %v164 = vmul.f32 %v153, %v156
  %v165 = vmul.f32 %v154, %v156
  %166 = vst [vmem:[%s2] sm:$0xff] %v158
  %167 = vst [vmem:[%s2 + $0x8] sm:$0xff] %v159
  %168 = vst [vmem:[%s2 + $0x10] sm:$0xff] %v160
  %169 = vst [vmem:[%s2 + $0x18] sm:$0xff] %v161
  %170 = vst [vmem:[%s2 + $0x20] sm:$0xff] %v162
  %171 = vst [vmem:[%s2 + $0x28] sm:$0xff] %v163
  %172 = vst [vmem:[%s2 + $0x30] sm:$0xff] %v164
  %173 = vst [vmem:[%s2 + $0x38] sm:$0xff] %v165
  // Predicated region
  $region10: #{llama_decoder_forward.5} parent=0 // pred_check
    _
  $region11: #{llama_decoder_forward.5} parent=0 // pred_check_branch
    %175 = sbr.rel (0) target = $region13
  $region12: #{llama_decoder_forward.5} parent=0 // pred_region
    _
  $region13: #{llama_decoder_forward.5} parent=0 // pred_fallthru
    _
  // Predicated region
  $region14: #{llama_decoder_forward.5} parent=0 // pred_check
    _
  $region15: #{llama_decoder_forward.5} parent=0 // pred_check_branch
    %177 = sbr.rel (0) target = $region17
  $region16: #{llama_decoder_forward.5} parent=0 // pred_region
    _
  $region17: #{llama_decoder_forward.5} parent=0 // pred_fallthru
    _

// kernel: llama_decoder_forward.3
$region0: #{llama_decoder_forward.3}
  #allocation0 [shape = 'u32[]', space=smem, size = 0x4, offset = 0x4, fixed_abs, tag = 'smem constant byte address 0x4 - core index']
  #allocation1 [shape = 'u32[72,128]{1,0:T(1,128)}', space=vmem, size = 0x9000, scoped, tag = 'internal scratch']
  %s0 = inlined_call_operand.vmem [shape: f32[64,128], index: 0, kind: input, shape index: {}]
  %s1 = inlined_call_operand.vmem [shape: f32[1,128], index: 1, kind: input, shape index: {}]
  %s2 = inlined_call_operand.vmem [shape: f32[1,128], index: 2, kind: input, shape index: {}]
  %s3 = inlined_call_operand.vmem [shape: bf16[128,384], index: 3, kind: input, shape index: {}]
  %s4 = inlined_call_operand.vmem [shape: bf16[128,128], index: 4, kind: input, shape index: {}]
  %s5 = inlined_call_operand.vmem [shape: bf16[128,512], index: 5, kind: input, shape index: {}]
  %s6 = inlined_call_operand.vmem [shape: bf16[256,128], index: 6, kind: input, shape index: {}]
  %s7 = inlined_call_operand.vmem [shape: f32[64,64], index: 7, kind: input, shape index: {}]
  %s8 = inlined_call_operand.vmem [shape: f32[64,64], index: 8, kind: input, shape index: {}]
  %s9 = inlined_call_operand.vmem [shape: f32[64,128], index: 9, kind: output, shape index: {}]
  %s10 = sld [smem:[#allocation0]]
  $region46: #{llama_decoder_forward.3} parent=0
    _
  %s12 = ssub.s32 1, %s10
  %s13 = scalar_select 0, %s12, %s10
  // Predicated region
  $region2: #{llama_decoder_forward.3} parent=0 // pred_check
    _
  $region3: #{llama_decoder_forward.3} parent=0 // pred_check_branch
    %15 = sbr.rel (0) target = $region5
  $region4: #{llama_decoder_forward.3} parent=0 // pred_region
    _
  $region5: #{llama_decoder_forward.3} parent=0 // pred_fallthru
    _
  // Predicated region
  $region6: #{llama_decoder_forward.3} parent=0 // pred_check
    _
  $region7: #{llama_decoder_forward.3} parent=0 // pred_check_branch
    %17 = sbr.rel (0) target = $region9
  $region8: #{llama_decoder_forward.3} parent=0 // pred_region
    _
  $region9: #{llama_decoder_forward.3} parent=0 // pred_fallthru
    _
  // Predicated region
  $region10: #{llama_decoder_forward.3} parent=0 // pred_check
    _
  $region11: #{llama_decoder_forward.3} parent=0 // pred_check_branch
    %19 = sbr.rel (0) target = $region13
  $region12: #{llama_decoder_forward.3} parent=0 // pred_region
    _
  $region13: #{llama_decoder_forward.3} parent=0 // pred_fallthru
    _
  // Predicated region
  $region14: #{llama_decoder_forward.3} parent=0 // pred_check
    _
  $region15: #{llama_decoder_forward.3} parent=0 // pred_check_branch
    %21 = sbr.rel (0) target = $region17
  $region16: #{llama_decoder_forward.3} parent=0 // pred_region
    _
  $region17: #{llama_decoder_forward.3} parent=0 // pred_fallthru
    _
  // Predicated region
  $region18: #{llama_decoder_forward.3} parent=0 // pred_check
    _
  $region19: #{llama_decoder_forward.3} parent=0 // pred_check_branch
    %23 = sbr.rel (0) target = $region21
  $region20: #{llama_decoder_forward.3} parent=0 // pred_region
    _
  $region21: #{llama_decoder_forward.3} parent=0 // pred_fallthru
    _
  // Predicated region
  $region22: #{llama_decoder_forward.3} parent=0 // pred_check
    _
  $region23: #{llama_decoder_forward.3} parent=0 // pred_check_branch
    %25 = sbr.rel (0) target = $region25
  $region24: #{llama_decoder_forward.3} parent=0 // pred_region
    _
  $region25: #{llama_decoder_forward.3} parent=0 // pred_fallthru
    _
  // Predicated region
  $region26: #{llama_decoder_forward.3} parent=0 // pred_check
    _
  $region27: #{llama_decoder_forward.3} parent=0 // pred_check_branch
    %27 = sbr.rel (0) target = $region29
  $region28: #{llama_decoder_forward.3} parent=0 // pred_region
    _
  $region29: #{llama_decoder_forward.3} parent=0 // pred_fallthru
    _
  // Predicated region
  $region30: #{llama_decoder_forward.3} parent=0 // pred_check
    _
  $region31: #{llama_decoder_forward.3} parent=0 // pred_check_branch
    %29 = sbr.rel (0) target = $region33
  $region32: #{llama_decoder_forward.3} parent=0 // pred_region
    _
  $region33: #{llama_decoder_forward.3} parent=0 // pred_fallthru
    _
  // Predicated region
  $region34: #{llama_decoder_forward.3} parent=0 // pred_check
    _
  $region35: #{llama_decoder_forward.3} parent=0 // pred_check_branch
    %31 = sbr.rel (0) target = $region37
  $region36: #{llama_decoder_forward.3} parent=0 // pred_region
    _
  $region37: #{llama_decoder_forward.3} parent=0 // pred_fallthru
    _
  %v33 = vld [vmem:[%s0] sm:$0xff]
  %v34 = vld [vmem:[%s0 + $0x8] sm:$0xff]
  %v35 = vld [vmem:[%s0 + $0x10] sm:$0xff]
  %v36 = vld [vmem:[%s0 + $0x18] sm:$0xff]
  %v37 = vld [vmem:[%s0 + $0x20] sm:$0xff]
  %v38 = vld [vmem:[%s0 + $0x28] sm:$0xff]
  %v39 = vld [vmem:[%s0 + $0x30] sm:$0xff]
  %v40 = vld [vmem:[%s0 + $0x38] sm:$0xff]
  %v41 = vld [vmem:[%s1] sm:$0x1]
  %v42 = vmul.f32 %v33, %v33
  %v43 = vmul.f32 %v34, %v34
  %v44 = vmul.f32 %v35, %v35
  %v45 = vmul.f32 %v36, %v36
  %v46 = vmul.f32 %v37, %v37
  %v47 = vmul.f32 %v38, %v38
  %v48 = vmul.f32 %v39, %v39
  %v49 = vmul.f32 %v40, %v40
  %50 = vadd.xlane.f32.xlu0 %v42
  %v51 = vpop.xlane.xlu0 %50
  %52 = vadd.xlane.f32.xlu0 %v43
  %v53 = vpop.xlane.xlu0 %52
  %54 = vadd.xlane.f32.xlu0 %v44
  %v55 = vpop.xlane.xlu0 %54
  %56 = vadd.xlane.f32.xlu0 %v45
  %v57 = vpop.xlane.xlu0 %56
  %58 = vadd.xlane.f32.xlu0 %v46
  %v59 = vpop.xlane.xlu0 %58
  %60 = vadd.xlane.f32.xlu0 %v47
  %v61 = vpop.xlane.xlu0 %60
  %62 = vadd.xlane.f32.xlu0 %v48
  %v63 = vpop.xlane.xlu0 %62
  %64 = vadd.xlane.f32.xlu0 %v49
  %v65 = vpop.xlane.xlu0 %64
  %v66 = vrcp.pop 128.0
  %v67 = vmul.f32 128.0, %v66
  %v68 = vsub.f32 1.0, %v67
  %v69 = vmul.f32 %v66, %v68
  %v70 = vadd.f32 %v66, %v69
  %vm71 = vweird.f32 %v66
  %v72 = vsel %vm71, %v66, %v70
  %v73 = vmul.f32 %v51, %v72
  %v74 = vmul.f32 %v53, %v72
  %v75 = vmul.f32 %v55, %v72
  %v76 = vmul.f32 %v57, %v72
  %v77 = vmul.f32 %v59, %v72
  %v78 = vmul.f32 %v61, %v72
  %v79 = vmul.f32 %v63, %v72
  %v80 = vmul.f32 %v65, %v72
  %v81 = vadd.f32 %v73, 1e-05
  %v82 = vadd.f32 %v74, 1e-05
  %v83 = vadd.f32 %v75, 1e-05
  %v84 = vadd.f32 %v76, 1e-05
  %v85 = vadd.f32 %v77, 1e-05
  %v86 = vadd.f32 %v78, 1e-05
  %v87 = vadd.f32 %v79, 1e-05
  %v88 = vadd.f32 %v80, 1e-05
  %v89 = vrsqrt.pop %v81
  %v90 = vmul.f32 %v89, %v81
  %v91 = vmul.f32 %v90, %v89
  %v92 = vmul.f32 0.5, %v91
  %v93 = vsub.f32 1.5, %v92
  %v94 = vmul.f32 %v89, %v93
  %vm95 = vweird.f32 %v81
  %vm96 = vweird.f32 %v89
  %vm97 = vmor %vm95, %vm96
  %v98 = vsel %vm97, %v89, %v94
  %v99 = vrsqrt.pop %v82
  %v100 = vmul.f32 %v99, %v82
  %v101 = vmul.f32 %v100, %v99
  %v102 = vmul.f32 0.5, %v101
  %v103 = vsub.f32 1.5, %v102
  %v104 = vmul.f32 %v99, %v103
  %vm105 = vweird.f32 %v82
  %vm106 = vweird.f32 %v99
  %vm107 = vmor %vm105, %vm106
  %v108 = vsel %vm107, %v99, %v104
  %v109 = vrsqrt.pop %v83
  %v110 = vmul.f32 %v109, %v83
  %v111 = vmul.f32 %v110, %v109
  %v112 = vmul.f32 0.5, %v111
  %v113 = vsub.f32 1.5, %v112
  %v114 = vmul.f32 %v109, %v113
  %vm115 = vweird.f32 %v83
  %vm116 = vweird.f32 %v109
  %vm117 = vmor %vm115, %vm116
  %v118 = vsel %vm117, %v109, %v114
  %v119 = vrsqrt.pop %v84
  %v120 = vmul.f32 %v119, %v84
  %v121 = vmul.f32 %v120, %v119
  %v122 = vmul.f32 0.5, %v121
  %v123 = vsub.f32 1.5, %v122
  %v124 = vmul.f32 %v119, %v123
  %vm125 = vweird.f32 %v84
  %vm126 = vweird.f32 %v119
  %vm127 = vmor %vm125, %vm126
  %v128 = vsel %vm127, %v119, %v124
  %v129 = vrsqrt.pop %v85
  %v130 = vmul.f32 %v129, %v85
  %v131 = vmul.f32 %v130, %v129
  %v132 = vmul.f32 0.5, %v131
  %v133 = vsub.f32 1.5, %v132
  %v134 = vmul.f32 %v129, %v133
  %vm135 = vweird.f32 %v85
  %vm136 = vweird.f32 %v129
  %vm137 = vmor %vm135, %vm136
  %v138 = vsel %vm137, %v129, %v134
  %v139 = vrsqrt.pop %v86
  %v140 = vmul.f32 %v139, %v86
  %v141 = vmul.f32 %v140, %v139
  %v142 = vmul.f32 0.5, %v141
  %v143 = vsub.f32 1.5, %v142
  %v144 = vmul.f32 %v139, %v143
  %vm145 = vweird.f32 %v86
  %vm146 = vweird.f32 %v139
  %vm147 = vmor %vm145, %vm146
  %v148 = vsel %vm147, %v139, %v144
  %v149 = vrsqrt.pop %v87
  %v150 = vmul.f32 %v149, %v87
  %v151 = vmul.f32 %v150, %v149
  %v152 = vmul.f32 0.5, %v151
  %v153 = vsub.f32 1.5, %v152
  %v154 = vmul.f32 %v149, %v153
  %vm155 = vweird.f32 %v87
  %vm156 = vweird.f32 %v149
  %vm157 = vmor %vm155, %vm156
  %v158 = vsel %vm157, %v149, %v154
  %v159 = vrsqrt.pop %v88
  %v160 = vmul.f32 %v159, %v88
  %v161 = vmul.f32 %v160, %v159
  %v162 = vmul.f32 0.5, %v161
  %v163 = vsub.f32 1.5, %v162
  %v164 = vmul.f32 %v159, %v163
  %vm165 = vweird.f32 %v88
  %vm166 = vweird.f32 %v159
  %vm167 = vmor %vm165, %vm166
  %v168 = vsel %vm167, %v159, %v164
  %v169 = vmul.f32 %v33, %v98
  %v170 = vmul.f32 %v34, %v108
  %v171 = vmul.f32 %v35, %v118
  %v172 = vmul.f32 %v36, %v128
  %v173 = vmul.f32 %v37, %v138
  %v174 = vmul.f32 %v38, %v148
  %v175 = vmul.f32 %v39, %v158
  %v176 = vmul.f32 %v40, %v168
  %v178 = vperm.slane %v41, 0
  %v180 = vmul.f32 %v169, %v178
  %v181 = vmul.f32 %v170, %v178
  %v182 = vmul.f32 %v171, %v178
  %v183 = vmul.f32 %v172, %v178
  %v184 = vmul.f32 %v173, %v178
  %v185 = vmul.f32 %v174, %v178
  %v186 = vmul.f32 %v175, %v178
  %v187 = vmul.f32 %v176, %v178
  %v188 = vpack.c.bf16 %v181, %v180
  %v189 = vpack.c.bf16 %v183, %v182
  %v190 = vpack.c.bf16 %v185, %v184
  %v191 = vpack.c.bf16 %v187, %v186
  %v192 = vld [vmem:[%s3] sm:$0xff]
  %v193 = vld [vmem:[%s3 + $0x8] sm:$0xf]
  %v194 = vld [vmem:[%s3 + $0xc] sm:$0xff]
  %v195 = vld [vmem:[%s3 + $0x14] sm:$0xf]
  %v196 = vld [vmem:[%s3 + $0x18] sm:$0xff]
  %v197 = vld [vmem:[%s3 + $0x20] sm:$0xf]
  %v198 = vld [vmem:[%s3 + $0x24] sm:$0xff]
  %v199 = vld [vmem:[%s3 + $0x2c] sm:$0xf]
  %v200 = vld [vmem:[%s3 + $0x30] sm:$0xff]
  %v201 = vld [vmem:[%s3 + $0x38] sm:$0xf]
  %v202 = vld [vmem:[%s3 + $0x3c] sm:$0xff]
  %v203 = vld [vmem:[%s3 + $0x44] sm:$0xf]
  %v204 = vld [vmem:[%s3 + $0x48] sm:$0xff]
  %v205 = vld [vmem:[%s3 + $0x50] sm:$0xf]
  %v206 = vld [vmem:[%s3 + $0x54] sm:$0xff]
  %v207 = vld [vmem:[%s3 + $0x5c] sm:$0xf]
  %v208 = vld [vmem:[%s3 + $0x60] sm:$0xff]
  %v209 = vld [vmem:[%s3 + $0x68] sm:$0xf]
  %v210 = vld [vmem:[%s3 + $0x6c] sm:$0xff]
  %v211 = vld [vmem:[%s3 + $0x74] sm:$0xf]
  %v212 = vld [vmem:[%s3 + $0x78] sm:$0xff]
  %v213 = vld [vmem:[%s3 + $0x80] sm:$0xf]
  %v214 = vld [vmem:[%s3 + $0x84] sm:$0xff]
  %v215 = vld [vmem:[%s3 + $0x8c] sm:$0xf]
  %v216 = vld [vmem:[%s3 + $0x90] sm:$0xff]
  %v217 = vld [vmem:[%s3 + $0x98] sm:$0xf]
  %v218 = vld [vmem:[%s3 + $0x9c] sm:$0xff]
  %v219 = vld [vmem:[%s3 + $0xa4] sm:$0xf]
  %v220 = vld [vmem:[%s3 + $0xa8] sm:$0xff]
  %v221 = vld [vmem:[%s3 + $0xb0] sm:$0xf]
  %v222 = vld [vmem:[%s3 + $0xb4] sm:$0xff]
  %v223 = vld [vmem:[%s3 + $0xbc] sm:$0xf]
  %v256 = vunpack.c.l.b16 %v192
  %v257 = vunpack.c.h.b16 %v192
  %v258 = vunpack.c.l.b16 %v193
  %v259 = vunpack.c.l.b16 %v194
  %v260 = vunpack.c.h.b16 %v194
  %v261 = vunpack.c.l.b16 %v195
  %v262 = vunpack.c.l.b16 %v196
  %v263 = vunpack.c.h.b16 %v196
  %v264 = vunpack.c.l.b16 %v197
  %v265 = vunpack.c.l.b16 %v198
  %v266 = vunpack.c.h.b16 %v198
  %v267 = vunpack.c.l.b16 %v199
  %v268 = vunpack.c.l.b16 %v200
  %v269 = vunpack.c.h.b16 %v200
  %v270 = vunpack.c.l.b16 %v201
  %v271 = vunpack.c.l.b16 %v202
  %v272 = vunpack.c.h.b16 %v202
  %v273 = vunpack.c.l.b16 %v203
  %v274 = vunpack.c.l.b16 %v204
  %v275 = vunpack.c.h.b16 %v204
  %v276 = vunpack.c.l.b16 %v205
  %v277 = vunpack.c.l.b16 %v206
  %v278 = vunpack.c.h.b16 %v206
  %v279 = vunpack.c.l.b16 %v207
  %v280 = vunpack.c.l.b16 %v208
  %v281 = vunpack.c.h.b16 %v208
  %v282 = vunpack.c.l.b16 %v209
  %v283 = vunpack.c.l.b16 %v210
  %v284 = vunpack.c.h.b16 %v210
  %v285 = vunpack.c.l.b16 %v211
  %v286 = vunpack.c.l.b16 %v212
  %v287 = vunpack.c.h.b16 %v212
  %v288 = vunpack.c.l.b16 %v213
  %v289 = vunpack.c.l.b16 %v214
  %v290 = vunpack.c.h.b16 %v214
  %v291 = vunpack.c.l.b16 %v215
  %v292 = vunpack.c.l.b16 %v216
  %v293 = vunpack.c.h.b16 %v216
  %v294 = vunpack.c.l.b16 %v217
  %v295 = vunpack.c.l.b16 %v218
  %v296 = vunpack.c.h.b16 %v218
  %v297 = vunpack.c.l.b16 %v219
  %v298 = vunpack.c.l.b16 %v220
  %v299 = vunpack.c.h.b16 %v220
  %v300 = vunpack.c.l.b16 %v221
  %v301 = vunpack.c.l.b16 %v222
  %v302 = vunpack.c.h.b16 %v222
  %v303 = vunpack.c.l.b16 %v223
  %v304 = vpack.c.b16 %v259, %v256
  %v305 = vpack.c.b16 %v260, %v257
  %v306 = vpack.c.b16 %v261, %v258
  %v307 = vpack.c.b16 %v265, %v262
  %v308 = vpack.c.b16 %v266, %v263
  %v309 = vpack.c.b16 %v267, %v264
  %v310 = vpack.c.b16 %v271, %v268
  %v311 = vpack.c.b16 %v272, %v269
  %v312 = vpack.c.b16 %v273, %v270
  %v313 = vpack.c.b16 %v277, %v274
  %v314 = vpack.c.b16 %v278, %v275
  %v315 = vpack.c.b16 %v279, %v276
  %v316 = vpack.c.b16 %v283, %v280
  %v317 = vpack.c.b16 %v284, %v281
  %v318 = vpack.c.b16 %v285, %v282
  %v319 = vpack.c.b16 %v289, %v286
  %v320 = vpack.c.b16 %v290, %v287
  %v321 = vpack.c.b16 %v291, %v288
  %v322 = vpack.c.b16 %v295, %v292
  %v323 = vpack.c.b16 %v296, %v293
  %v324 = vpack.c.b16 %v297, %v294
  %v325 = vpack.c.b16 %v301, %v298
  %v326 = vpack.c.b16 %v302, %v299
  %v327 = vpack.c.b16 %v303, %v300
  %352 = vmatpush.bf16.msra.mxu0 %v325
  %353 = vmatpush.bf16.msra.mxu0 %v322
  %354 = vmatpush.bf16.msra.mxu0 %v319
  %355 = vmatpush.bf16.msra.mxu0 %v316
  %356 = vmatpush.bf16.msra.mxu0 %v313
  %357 = vmatpush.bf16.msra.mxu0 %v310
  %358 = vmatpush.bf16.msra.mxu0 %v307
  %359 = vmatpush.bf16.msra.mxu0 %v304
  %360 = vmatmul.bf16.gmra.mxu0 %v188
  %v361 = vpop.f32.mrf.mxu0
  %v362 = vadd.f32 0.0, %v361
  %v363 = vpop.f32.mrf.mxu0
  %v364 = vadd.f32 0.0, %v363
  %365 = vmatmul.bf16.gmra.mxu0 %v189
  %v366 = vpop.f32.mrf.mxu0
  %v367 = vadd.f32 0.0, %v366
  %v368 = vpop.f32.mrf.mxu0
  %v369 = vadd.f32 0.0, %v368
  %370 = vmatmul.bf16.gmra.mxu0 %v190
  %v371 = vpop.f32.mrf.mxu0
  %v372 = vadd.f32 0.0, %v371
  %v373 = vpop.f32.mrf.mxu0
  %v374 = vadd.f32 0.0, %v373
  %375 = vmatmul.bf16.gmra.mxu0 %v191
  %v376 = vpop.f32.mrf.mxu0
  %v377 = vadd.f32 0.0, %v376
  %v378 = vpop.f32.mrf.mxu0
  %v379 = vadd.f32 0.0, %v378
  %380 = vdwg.mxu0
  %381 = vmatpush.bf16.msra.mxu0 %v326
  %382 = vmatpush.bf16.msra.mxu0 %v323
  %383 = vmatpush.bf16.msra.mxu0 %v320
  %384 = vmatpush.bf16.msra.mxu0 %v317
  %385 = vmatpush.bf16.msra.mxu0 %v314
  %386 = vmatpush.bf16.msra.mxu0 %v311
  %387 = vmatpush.bf16.msra.mxu0 %v308
  %388 = vmatpush.bf16.msra.mxu0 %v305
  %389 = vmatmul.bf16.gmra.mxu0 %v188
  %v390 = vpop.f32.mrf.mxu0
  %v391 = vadd.f32 0.0, %v390
  %v392 = vpop.f32.mrf.mxu0
  %v393 = vadd.f32 0.0, %v392
  %394 = vmatmul.bf16.gmra.mxu0 %v189
  %v395 = vpop.f32.mrf.mxu0
  %v396 = vadd.f32 0.0, %v395
  %v397 = vpop.f32.mrf.mxu0
  %v398 = vadd.f32 0.0, %v397
  %399 = vmatmul.bf16.gmra.mxu0 %v190
  %v400 = vpop.f32.mrf.mxu0
  %v401 = vadd.f32 0.0, %v400
  %v402 = vpop.f32.mrf.mxu0
  %v403 = vadd.f32 0.0, %v402
  %404 = vmatmul.bf16.gmra.mxu0 %v191
  %v405 = vpop.f32.mrf.mxu0
  %v406 = vadd.f32 0.0, %v405
  %v407 = vpop.f32.mrf.mxu0
  %v408 = vadd.f32 0.0, %v407
  %409 = vdwg.mxu0
  %410 = vmatpush.bf16.msra.mxu0 %v327
  %411 = vmatpush.bf16.msra.mxu0 %v324
  %412 = vmatpush.bf16.msra.mxu0 %v321
  %413 = vmatpush.bf16.msra.mxu0 %v318
  %414 = vmatpush.bf16.msra.mxu0 %v315
  %415 = vmatpush.bf16.msra.mxu0 %v312
  %416 = vmatpush.bf16.msra.mxu0 %v309
  %417 = vmatpush.bf16.msra.mxu0 %v306
  %418 = vmatmul.bf16.gmra.mxu0 %v188
  %v419 = vpop.f32.mrf.mxu0
  %v420 = vadd.f32 0.0, %v419
  %v421 = vpop.f32.mrf.mxu0
  %v422 = vadd.f32 0.0, %v421
  %423 = vmatmul.bf16.gmra.mxu0 %v189
  %v424 = vpop.f32.mrf.mxu0
  %v425 = vadd.f32 0.0, %v424
  %v426 = vpop.f32.mrf.mxu0
  %v427 = vadd.f32 0.0, %v426
  %428 = vmatmul.bf16.gmra.mxu0 %v190
  %v429 = vpop.f32.mrf.mxu0
  %v430 = vadd.f32 0.0, %v429
  %v431 = vpop.f32.mrf.mxu0
  %v432 = vadd.f32 0.0, %v431
  %433 = vmatmul.bf16.gmra.mxu0 %v191
  %v434 = vpop.f32.mrf.mxu0
  %v435 = vadd.f32 0.0, %v434
  %v436 = vpop.f32.mrf.mxu0
  %v437 = vadd.f32 0.0, %v436
  %438 = vdwg.mxu0
  %v439 = vld [vmem:[%s7] sm:$0xff]
  %v440 = vld [vmem:[%s7 + $0x8] sm:$0xff]
  %v441 = vld [vmem:[%s7 + $0x10] sm:$0xff]
  %v442 = vld [vmem:[%s7 + $0x18] sm:$0xff]
  %v443 = vld [vmem:[%s7 + $0x20] sm:$0xff]
  %v444 = vld [vmem:[%s7 + $0x28] sm:$0xff]
  %v445 = vld [vmem:[%s7 + $0x30] sm:$0xff]
  %v446 = vld [vmem:[%s7 + $0x38] sm:$0xff]
  %v447 = vld [vmem:[%s8] sm:$0xff]
  %v448 = vld [vmem:[%s8 + $0x8] sm:$0xff]
  %v449 = vld [vmem:[%s8 + $0x10] sm:$0xff]
  %v450 = vld [vmem:[%s8 + $0x18] sm:$0xff]
  %v451 = vld [vmem:[%s8 + $0x20] sm:$0xff]
  %v452 = vld [vmem:[%s8 + $0x28] sm:$0xff]
  %v453 = vld [vmem:[%s8 + $0x30] sm:$0xff]
  %v454 = vld [vmem:[%s8 + $0x38] sm:$0xff]
  %v455 = vlaneseq
  %v456 = vshrl.u32 %v455, 7
  %v457 = vadd.s32 %v456, 8
  %v458 = vadd.s32 %v456, 16
  %v459 = vadd.s32 %v456, 24
  %v460 = vadd.s32 %v456, 32
  %v461 = vadd.s32 %v456, 40
  %v462 = vadd.s32 %v456, 48
  %v463 = vadd.s32 %v456, 56
  %v464 = vlaneseq
  %v465 = vand.u32 %v464, 127
  %vm466 = vcmp.le.s32.totalorder %v465, %v456
  %vm467 = vcmp.le.s32.totalorder %v465, %v457
  %vm468 = vcmp.le.s32.totalorder %v465, %v458
  %vm469 = vcmp.le.s32.totalorder %v465, %v459
  %vm470 = vcmp.le.s32.totalorder %v465, %v460
  %vm471 = vcmp.le.s32.totalorder %v465, %v461
  %vm472 = vcmp.le.s32.totalorder %v465, %v462
  %vm473 = vcmp.le.s32.totalorder %v465, %v463
  %v474 = vmul.f32 %v362, %v439
  %v475 = vmul.f32 %v364, %v440
  %v476 = vmul.f32 %v367, %v441
  %v477 = vmul.f32 %v369, %v442
  %v478 = vmul.f32 %v372, %v443
  %v479 = vmul.f32 %v374, %v444
  %v480 = vmul.f32 %v377, %v445
  %v481 = vmul.f32 %v379, %v446
  %vm482 = vcmask 1048064
  %483 = vrot.lane.b32.xlu0 %v362, 64
  %v484 = vpop.permute.xlu0 %483
  %v485 = vsel %vm482, %v484, %v362
  %486 = vrot.lane.b32.xlu0 %v364, 64
  %v487 = vpop.permute.xlu0 %486
  %v488 = vsel %vm482, %v487, %v364
  %489 = vrot.lane.b32.xlu0 %v367, 64
  %v490 = vpop.permute.xlu0 %489
  %v491 = vsel %vm482, %v490, %v367
  %492 = vrot.lane.b32.xlu0 %v369, 64
  %v493 = vpop.permute.xlu0 %492
  %v494 = vsel %vm482, %v493, %v369
  %495 = vrot.lane.b32.xlu0 %v372, 64
  %v496 = vpop.permute.xlu0 %495
  %v497 = vsel %vm482, %v496, %v372
  %498 = vrot.lane.b32.xlu0 %v374, 64
  %v499 = vpop.permute.xlu0 %498
  %v500 = vsel %vm482, %v499, %v374
  %501 = vrot.lane.b32.xlu0 %v377, 64
  %v502 = vpop.permute.xlu0 %501
  %v503 = vsel %vm482, %v502, %v377
  %504 = vrot.lane.b32.xlu0 %v379, 64
  %v505 = vpop.permute.xlu0 %504
  %v506 = vsel %vm482, %v505, %v379
  %507 = vrot.lane.b32.xlu0 %v485, 64
  %v508 = vpop.permute.xlu0 %507
  %509 = vrot.lane.b32.xlu0 %v488, 64
  %v510 = vpop.permute.xlu0 %509
  %511 = vrot.lane.b32.xlu0 %v491, 64
  %v512 = vpop.permute.xlu0 %511
  %513 = vrot.lane.b32.xlu0 %v494, 64
  %v514 = vpop.permute.xlu0 %513
  %515 = vrot.lane.b32.xlu0 %v497, 64
  %v516 = vpop.permute.xlu0 %515
  %517 = vrot.lane.b32.xlu0 %v500, 64
  %v518 = vpop.permute.xlu0 %517
  %519 = vrot.lane.b32.xlu0 %v503, 64
  %v520 = vpop.permute.xlu0 %519
  %521 = vrot.lane.b32.xlu0 %v506, 64
  %v522 = vpop.permute.xlu0 %521
  %v523 = vsel %vm482, %v508, %v362
  %v524 = vsel %vm482, %v510, %v364
  %v525 = vsel %vm482, %v512, %v367
  %v526 = vsel %vm482, %v514, %v369
  %v527 = vsel %vm482, %v516, %v372
  %v528 = vsel %vm482, %v518, %v374
  %v529 = vsel %vm482, %v520, %v377
  %v530 = vsel %vm482, %v522, %v379
  %539 = vrot.lane.b32.xlu0 %v447, 32
  %v540 = vpop.permute.xlu0 %539
  %541 = vrot.lane.b32.xlu0 %v448, 32
  %v542 = vpop.permute.xlu0 %541
  %543 = vrot.lane.b32.xlu0 %v449, 32
  %v544 = vpop.permute.xlu0 %543
  %545 = vrot.lane.b32.xlu0 %v450, 32
  %v546 = vpop.permute.xlu0 %545
  %547 = vrot.lane.b32.xlu0 %v451, 32
  %v548 = vpop.permute.xlu0 %547
  %549 = vrot.lane.b32.xlu0 %v452, 32
  %v550 = vpop.permute.xlu0 %549
  %551 = vrot.lane.b32.xlu0 %v453, 32
  %v552 = vpop.permute.xlu0 %551
  %553 = vrot.lane.b32.xlu0 %v454, 32
  %v554 = vpop.permute.xlu0 %553
  %v563 = vmul.f32 %v523, %v540
  %v564 = vmul.f32 %v524, %v542
  %v565 = vmul.f32 %v525, %v544
  %v566 = vmul.f32 %v526, %v546
  %v567 = vmul.f32 %v527, %v548
  %v568 = vmul.f32 %v528, %v550
  %v569 = vmul.f32 %v529, %v552
  %v570 = vmul.f32 %v530, %v554
  %579 = vrot.lane.b32.xlu0 %v563, 96
  %v580 = vpop.permute.xlu0 %579
  %581 = vrot.lane.b32.xlu0 %v564, 96
  %v582 = vpop.permute.xlu0 %581
  %583 = vrot.lane.b32.xlu0 %v565, 96
  %v584 = vpop.permute.xlu0 %583
  %585 = vrot.lane.b32.xlu0 %v566, 96
  %v586 = vpop.permute.xlu0 %585
  %587 = vrot.lane.b32.xlu0 %v567, 96
  %v588 = vpop.permute.xlu0 %587
  %589 = vrot.lane.b32.xlu0 %v568, 96
  %v590 = vpop.permute.xlu0 %589
  %591 = vrot.lane.b32.xlu0 %v569, 96
  %v592 = vpop.permute.xlu0 %591
  %593 = vrot.lane.b32.xlu0 %v570, 96
  %v594 = vpop.permute.xlu0 %593
  %v603 = vadd.f32 %v474, %v580
  %v604 = vadd.f32 %v475, %v582
  %v605 = vadd.f32 %v476, %v584
  %v606 = vadd.f32 %v477, %v586
  %v607 = vadd.f32 %v478, %v588
  %v608 = vadd.f32 %v479, %v590
  %v609 = vadd.f32 %v480, %v592
  %v610 = vadd.f32 %v481, %v594
  %v611 = vmul.f32 %v391, %v439
  %v612 = vmul.f32 %v393, %v440
  %v613 = vmul.f32 %v396, %v441
  %v614 = vmul.f32 %v398, %v442
  %v615 = vmul.f32 %v401, %v443
  %v616 = vmul.f32 %v403, %v444
  %v617 = vmul.f32 %v406, %v445
  %v618 = vmul.f32 %v408, %v446
  %619 = vrot.lane.b32.xlu0 %v391, 64
  %v620 = vpop.permute.xlu0 %619
  %v621 = vsel %vm482, %v620, %v391
  %622 = vrot.lane.b32.xlu0 %v393, 64
  %v623 = vpop.permute.xlu0 %622
  %v624 = vsel %vm482, %v623, %v393
  %625 = vrot.lane.b32.xlu0 %v396, 64
  %v626 = vpop.permute.xlu0 %625
  %v627 = vsel %vm482, %v626, %v396
  %628 = vrot.lane.b32.xlu0 %v398, 64
  %v629 = vpop.permute.xlu0 %628
  %v630 = vsel %vm482, %v629, %v398
  %631 = vrot.lane.b32.xlu0 %v401, 64
  %v632 = vpop.permute.xlu0 %631
  %v633 = vsel %vm482, %v632, %v401
  %634 = vrot.lane.b32.xlu0 %v403, 64
  %v635 = vpop.permute.xlu0 %634
  %v636 = vsel %vm482, %v635, %v403
  %637 = vrot.lane.b32.xlu0 %v406, 64
  %v638 = vpop.permute.xlu0 %637
  %v639 = vsel %vm482, %v638, %v406
  %640 = vrot.lane.b32.xlu0 %v408, 64
  %v641 = vpop.permute.xlu0 %640
  %v642 = vsel %vm482, %v641, %v408
  %643 = vrot.lane.b32.xlu0 %v621, 64
  %v644 = vpop.permute.xlu0 %643
  %645 = vrot.lane.b32.xlu0 %v624, 64
  %v646 = vpop.permute.xlu0 %645
  %647 = vrot.lane.b32.xlu0 %v627, 64
  %v648 = vpop.permute.xlu0 %647
  %649 = vrot.lane.b32.xlu0 %v630, 64
  %v650 = vpop.permute.xlu0 %649
  %651 = vrot.lane.b32.xlu0 %v633, 64
  %v652 = vpop.permute.xlu0 %651
  %653 = vrot.lane.b32.xlu0 %v636, 64
  %v654 = vpop.permute.xlu0 %653
  %655 = vrot.lane.b32.xlu0 %v639, 64
  %v656 = vpop.permute.xlu0 %655
  %657 = vrot.lane.b32.xlu0 %v642, 64
  %v658 = vpop.permute.xlu0 %657
  %v659 = vsel %vm482, %v644, %v391
  %v660 = vsel %vm482, %v646, %v393
  %v661 = vsel %vm482, %v648, %v396
  %v662 = vsel %vm482, %v650, %v398
  %v663 = vsel %vm482, %v652, %v401
  %v664 = vsel %vm482, %v654, %v403
  %v665 = vsel %vm482, %v656, %v406
  %v666 = vsel %vm482, %v658, %v408
  %v667 = vmul.f32 %v659, %v540
  %v668 = vmul.f32 %v660, %v542
  %v669 = vmul.f32 %v661, %v544
  %v670 = vmul.f32 %v662, %v546
  %v671 = vmul.f32 %v663, %v548
  %v672 = vmul.f32 %v664, %v550
  %v673 = vmul.f32 %v665, %v552
  %v674 = vmul.f32 %v666, %v554
  %683 = vrot.lane.b32.xlu0 %v667, 96
  %v684 = vpop.permute.xlu0 %683
  %685 = vrot.lane.b32.xlu0 %v668, 96
  %v686 = vpop.permute.xlu0 %685
  %687 = vrot.lane.b32.xlu0 %v669, 96
  %v688 = vpop.permute.xlu0 %687
  %689 = vrot.lane.b32.xlu0 %v670, 96
  %v690 = vpop.permute.xlu0 %689
  %691 = vrot.lane.b32.xlu0 %v671, 96
  %v692 = vpop.permute.xlu0 %691
  %693 = vrot.lane.b32.xlu0 %v672, 96
  %v694 = vpop.permute.xlu0 %693
  %695 = vrot.lane.b32.xlu0 %v673, 96
  %v696 = vpop.permute.xlu0 %695
  %697 = vrot.lane.b32.xlu0 %v674, 96
  %v698 = vpop.permute.xlu0 %697
  %v707 = vadd.f32 %v611, %v684
  %v708 = vadd.f32 %v612, %v686
  %v709 = vadd.f32 %v613, %v688
  %v710 = vadd.f32 %v614, %v690
  %v711 = vadd.f32 %v615, %v692
  %v712 = vadd.f32 %v616, %v694
  %v713 = vadd.f32 %v617, %v696
  %v714 = vadd.f32 %v618, %v698
  %v715 = vpack.c.bf16 %v604, %v603
  %v716 = vpack.c.bf16 %v606, %v605
  %v717 = vpack.c.bf16 %v608, %v607
  %v718 = vpack.c.bf16 %v610, %v609
  %v719 = vpack.c.bf16 %v708, %v707
  %v720 = vpack.c.bf16 %v710, %v709
  %v721 = vpack.c.bf16 %v712, %v711
  %v722 = vpack.c.bf16 %v714, %v713
  %vm723 = vcmask 523264
  %v725 = vsel %vm723, %v715, 0
  %v728 = vsel %vm723, %v716, 0
  %v731 = vsel %vm723, %v717, 0
  %v734 = vsel %vm723, %v718, 0
  %v737 = vsel %vm723, %v719, 0
  %v740 = vsel %vm723, %v720, 0
  %v743 = vsel %vm723, %v721, 0
  %v746 = vsel %vm723, %v722, 0
  %748 = vmatpush.bf16.xpose.msra.mxu0 0
  %749 = vmatpush.bf16.xpose.msra.mxu0 0
  %750 = vmatpush.bf16.xpose.msra.mxu0 0
  %751 = vmatpush.bf16.xpose.msra.mxu0 0
  %752 = vmatpush.bf16.xpose.msra.mxu0 %v746
  %753 = vmatpush.bf16.xpose.msra.mxu0 %v743
  %754 = vmatpush.bf16.xpose.msra.mxu0 %v740
  %755 = vmatpush.bf16.xpose.msra.mxu0 %v737
  %756 = vmatmul.bf16.gmra.mxu0 %v725
  %v757 = vpop.f32.mrf.mxu0
  %v758 = vadd.f32 0.0, %v757
  %v759 = vpop.f32.mrf.mxu0
  %v760 = vadd.f32 0.0, %v759
  %761 = vmatmul.bf16.gmra.mxu0 %v728
  %v762 = vpop.f32.mrf.mxu0
  %v763 = vadd.f32 0.0, %v762
  %v764 = vpop.f32.mrf.mxu0
  %v765 = vadd.f32 0.0, %v764
  %766 = vmatmul.bf16.gmra.mxu0 %v731
  %v767 = vpop.f32.mrf.mxu0
  %v768 = vadd.f32 0.0, %v767
  %v769 = vpop.f32.mrf.mxu0
  %v770 = vadd.f32 0.0, %v769
  %771 = vmatmul.bf16.gmra.mxu0 %v734
  %v772 = vpop.f32.mrf.mxu0
  %v773 = vadd.f32 0.0, %v772
  %v774 = vpop.f32.mrf.mxu0
  %v775 = vadd.f32 0.0, %v774
  %776 = vdwg.mxu0
  %v777 = vmul.f32 %v758, 0.125
  %v778 = vmul.f32 %v760, 0.125
  %v779 = vmul.f32 %v763, 0.125
  %v780 = vmul.f32 %v765, 0.125
  %v781 = vmul.f32 %v768, 0.125
  %v782 = vmul.f32 %v770, 0.125
  %v783 = vmul.f32 %v773, 0.125
  %v784 = vmul.f32 %v775, 0.125
  %v785 = vsel %vm466, %v777, -inf
  %v786 = vsel %vm467, %v778, -inf
  %v787 = vsel %vm468, %v779, -inf
  %v788 = vsel %vm469, %v780, -inf
  %v789 = vsel %vm470, %v781, -inf
  %v790 = vsel %vm471, %v782, -inf
  %v791 = vsel %vm472, %v783, -inf
  %v792 = vsel %vm473, %v784, -inf
  %v793 = vsel %vm723, %v785, -inf
  %794 = vmax.xlane.f32.xlu0 %v793
  %v795 = vpop.xlane.xlu0 %794
  %v796 = vsel %vm723, %v786, -inf
  %797 = vmax.xlane.f32.xlu0 %v796
  %v798 = vpop.xlane.xlu0 %797
  %v799 = vsel %vm723, %v787, -inf
  %800 = vmax.xlane.f32.xlu0 %v799
  %v801 = vpop.xlane.xlu0 %800
  %v802 = vsel %vm723, %v788, -inf
  %803 = vmax.xlane.f32.xlu0 %v802
  %v804 = vpop.xlane.xlu0 %803
  %v805 = vsel %vm723, %v789, -inf
  %806 = vmax.xlane.f32.xlu0 %v805
  %v807 = vpop.xlane.xlu0 %806
  %v808 = vsel %vm723, %v790, -inf
  %809 = vmax.xlane.f32.xlu0 %v808
  %v810 = vpop.xlane.xlu0 %809
  %v811 = vsel %vm723, %v791, -inf
  %812 = vmax.xlane.f32.xlu0 %v811
  %v813 = vpop.xlane.xlu0 %812
  %v814 = vsel %vm723, %v792, -inf
  %815 = vmax.xlane.f32.xlu0 %v814
  %v816 = vpop.xlane.xlu0 %815
  %v817 = vsub.f32 %v785, %v795
  %v818 = vsub.f32 %v786, %v798
  %v819 = vsub.f32 %v787, %v801
  %v820 = vsub.f32 %v788, %v804
  %v821 = vsub.f32 %v789, %v807
  %v822 = vsub.f32 %v790, %v810
  %v823 = vsub.f32 %v791, %v813
  %v824 = vsub.f32 %v792, %v816
  %v825 = vmul.f32 %v817, 1.442695
  %v826 = vpow.pop %v825
  %v827 = vmul.f32 %v818, 1.442695
  %v828 = vpow.pop %v827
  %v829 = vmul.f32 %v819, 1.442695
  %v830 = vpow.pop %v829
  %v831 = vmul.f32 %v820, 1.442695
  %v832 = vpow.pop %v831
  %v833 = vmul.f32 %v821, 1.442695
  %v834 = vpow.pop %v833
  %v835 = vmul.f32 %v822, 1.442695
  %v836 = vpow.pop %v835
  %v837 = vmul.f32 %v823, 1.442695
  %v838 = vpow.pop %v837
  %v839 = vmul.f32 %v824, 1.442695
  %v840 = vpow.pop %v839
  %v841 = vsel %vm723, %v826, 0.0
  %842 = vadd.xlane.f32.xlu0 %v841
  %v843 = vpop.xlane.xlu0 %842
  %v844 = vsel %vm723, %v828, 0.0
  %845 = vadd.xlane.f32.xlu0 %v844
  %v846 = vpop.xlane.xlu0 %845
  %v847 = vsel %vm723, %v830, 0.0
  %848 = vadd.xlane.f32.xlu0 %v847
  %v849 = vpop.xlane.xlu0 %848
  %v850 = vsel %vm723, %v832, 0.0
  %851 = vadd.xlane.f32.xlu0 %v850
  %v852 = vpop.xlane.xlu0 %851
  %v853 = vsel %vm723, %v834, 0.0
  %854 = vadd.xlane.f32.xlu0 %v853
  %v855 = vpop.xlane.xlu0 %854
  %v856 = vsel %vm723, %v836, 0.0
  %857 = vadd.xlane.f32.xlu0 %v856
  %v858 = vpop.xlane.xlu0 %857
  %v859 = vsel %vm723, %v838, 0.0
  %860 = vadd.xlane.f32.xlu0 %v859
  %v861 = vpop.xlane.xlu0 %860
  %v862 = vsel %vm723, %v840, 0.0
  %863 = vadd.xlane.f32.xlu0 %v862
  %v864 = vpop.xlane.xlu0 %863
  %v865 = vrcp.pop %v843
  %v866 = vrcp.pop %v846
  %v867 = vrcp.pop %v849
  %v868 = vrcp.pop %v852
  %v869 = vrcp.pop %v855
  %v870 = vrcp.pop %v858
  %v871 = vrcp.pop %v861
  %v872 = vrcp.pop %v864
  %v873 = vmul.f32 %v826, %v865
  %v874 = vmul.f32 %v828, %v866
  %v875 = vmul.f32 %v830, %v867
  %v876 = vmul.f32 %v832, %v868
  %v877 = vmul.f32 %v834, %v869
  %v878 = vmul.f32 %v836, %v870
  %v879 = vmul.f32 %v838, %v871
  %v880 = vmul.f32 %v840, %v872
  %v881 = vpack.c.bf16 %v874, %v873
  %v882 = vpack.c.bf16 %v876, %v875
  %v883 = vpack.c.bf16 %v878, %v877
  %v884 = vpack.c.bf16 %v880, %v879
  %v885 = vpack.c.bf16 %v422, %v420
  %v886 = vpack.c.bf16 %v427, %v425
  %v887 = vpack.c.bf16 %v432, %v430
  %v888 = vpack.c.bf16 %v437, %v435
  %v890 = vsel %vm723, %v881, 0
  %v893 = vsel %vm723, %v882, 0
  %v896 = vsel %vm723, %v883, 0
  %v899 = vsel %vm723, %v884, 0
  %901 = vmatpush.bf16.msra.mxu0 0
  %902 = vmatpush.bf16.msra.mxu0 0
  %903 = vmatpush.bf16.msra.mxu0 0
  %904 = vmatpush.bf16.msra.mxu0 0
  %905 = vmatpush.bf16.msra.mxu0 %v888
  %906 = vmatpush.bf16.msra.mxu0 %v887
  %907 = vmatpush.bf16.msra.mxu0 %v886
  %908 = vmatpush.bf16.msra.mxu0 %v885
  %909 = vmatmul.bf16.gmra.mxu0 %v890
  %v910 = vpop.f32.mrf.mxu0
  %v911 = vadd.f32 0.0, %v910
  %v912 = vpop.f32.mrf.mxu0
  %v913 = vadd.f32 0.0, %v912
  %914 = vmatmul.bf16.gmra.mxu0 %v893
  %v915 = vpop.f32.mrf.mxu0
  %v916 = vadd.f32 0.0, %v915
  %v917 = vpop.f32.mrf.mxu0
  %v918 = vadd.f32 0.0, %v917
  %919 = vmatmul.bf16.gmra.mxu0 %v896
  %v920 = vpop.f32.mrf.mxu0
  %v921 = vadd.f32 0.0, %v920
  %v922 = vpop.f32.mrf.mxu0
  %v923 = vadd.f32 0.0, %v922
  %924 = vmatmul.bf16.gmra.mxu0 %v899
  %v925 = vpop.f32.mrf.mxu0
  %v926 = vadd.f32 0.0, %v925
  %v927 = vpop.f32.mrf.mxu0
  %v928 = vadd.f32 0.0, %v927
  %929 = vdwg.mxu0
  %v930 = vpack.c.bf16 %v913, %v911
  %v931 = vpack.c.bf16 %v918, %v916
  %v932 = vpack.c.bf16 %v923, %v921
  %v933 = vpack.c.bf16 %v928, %v926
  %v934 = vld [vmem:[%s4] sm:$0xf]
  %v935 = vld [vmem:[%s4 + $0x4] sm:$0xf]
  %v936 = vld [vmem:[%s4 + $0x8] sm:$0xf]
  %v937 = vld [vmem:[%s4 + $0xc] sm:$0xf]
  %v938 = vld [vmem:[%s4 + $0x10] sm:$0xf]
  %v939 = vld [vmem:[%s4 + $0x14] sm:$0xf]
  %v940 = vld [vmem:[%s4 + $0x18] sm:$0xf]
  %v941 = vld [vmem:[%s4 + $0x1c] sm:$0xf]
  %950 = vrot.lane.b32.xlu0 %v439, 64
  %v951 = vpop.permute.xlu0 %950
  %952 = vrot.lane.b32.xlu0 %v440, 64
  %v953 = vpop.permute.xlu0 %952
  %954 = vrot.lane.b32.xlu0 %v441, 64
  %v955 = vpop.permute.xlu0 %954
  %956 = vrot.lane.b32.xlu0 %v442, 64
  %v957 = vpop.permute.xlu0 %956
  %958 = vrot.lane.b32.xlu0 %v443, 64
  %v959 = vpop.permute.xlu0 %958
  %960 = vrot.lane.b32.xlu0 %v444, 64
  %v961 = vpop.permute.xlu0 %960
  %962 = vrot.lane.b32.xlu0 %v445, 64
  %v963 = vpop.permute.xlu0 %962
  %964 = vrot.lane.b32.xlu0 %v446, 64
  %v965 = vpop.permute.xlu0 %964
  %v974 = vmul.f32 %v362, %v951
  %v975 = vmul.f32 %v364, %v953
  %v976 = vmul.f32 %v367, %v955
  %v977 = vmul.f32 %v369, %v957
  %v978 = vmul.f32 %v372, %v959
  %v979 = vmul.f32 %v374, %v961
  %v980 = vmul.f32 %v377, %v963
  %v981 = vmul.f32 %v379, %v965
  %990 = vrot.lane.b32.xlu0 %v362, 64
  %v991 = vpop.permute.xlu0 %990
  %992 = vrot.lane.b32.xlu0 %v364, 64
  %v993 = vpop.permute.xlu0 %992
  %994 = vrot.lane.b32.xlu0 %v367, 64
  %v995 = vpop.permute.xlu0 %994
  %996 = vrot.lane.b32.xlu0 %v369, 64
  %v997 = vpop.permute.xlu0 %996
  %998 = vrot.lane.b32.xlu0 %v372, 64
  %v999 = vpop.permute.xlu0 %998
  %1000 = vrot.lane.b32.xlu0 %v374, 64
  %v1001 = vpop.permute.xlu0 %1000
  %1002 = vrot.lane.b32.xlu0 %v377, 64
  %v1003 = vpop.permute.xlu0 %1002
  %1004 = vrot.lane.b32.xlu0 %v379, 64
  %v1005 = vpop.permute.xlu0 %1004
  %1014 = vrot.lane.b32.xlu0 %v991, 64
  %v1015 = vpop.permute.xlu0 %1014
  %v1016 = vsel %vm482, %v1015, %v991
  %1017 = vrot.lane.b32.xlu0 %v993, 64
  %v1018 = vpop.permute.xlu0 %1017
  %v1019 = vsel %vm482, %v1018, %v993
  %1020 = vrot.lane.b32.xlu0 %v995, 64
  %v1021 = vpop.permute.xlu0 %1020
  %v1022 = vsel %vm482, %v1021, %v995
  %1023 = vrot.lane.b32.xlu0 %v997, 64
  %v1024 = vpop.permute.xlu0 %1023
  %v1025 = vsel %vm482, %v1024, %v997
  %1026 = vrot.lane.b32.xlu0 %v999, 64
  %v1027 = vpop.permute.xlu0 %1026
  %v1028 = vsel %vm482, %v1027, %v999
  %1029 = vrot.lane.b32.xlu0 %v1001, 64
  %v1030 = vpop.permute.xlu0 %1029
  %v1031 = vsel %vm482, %v1030, %v1001
  %1032 = vrot.lane.b32.xlu0 %v1003, 64
  %v1033 = vpop.permute.xlu0 %1032
  %v1034 = vsel %vm482, %v1033, %v1003
  %1035 = vrot.lane.b32.xlu0 %v1005, 64
  %v1036 = vpop.permute.xlu0 %1035
  %v1037 = vsel %vm482, %v1036, %v1005
  %1038 = vrot.lane.b32.xlu0 %v1016, 64
  %v1039 = vpop.permute.xlu0 %1038
  %1040 = vrot.lane.b32.xlu0 %v1019, 64
  %v1041 = vpop.permute.xlu0 %1040
  %1042 = vrot.lane.b32.xlu0 %v1022, 64
  %v1043 = vpop.permute.xlu0 %1042
  %1044 = vrot.lane.b32.xlu0 %v1025, 64
  %v1045 = vpop.permute.xlu0 %1044
  %1046 = vrot.lane.b32.xlu0 %v1028, 64
  %v1047 = vpop.permute.xlu0 %1046
  %1048 = vrot.lane.b32.xlu0 %v1031, 64
  %v1049 = vpop.permute.xlu0 %1048
  %1050 = vrot.lane.b32.xlu0 %v1034, 64
  %v1051 = vpop.permute.xlu0 %1050
  %1052 = vrot.lane.b32.xlu0 %v1037, 64
  %v1053 = vpop.permute.xlu0 %1052
  %v1054 = vsel %vm482, %v1039, %v991
  %v1055 = vsel %vm482, %v1041, %v993
  %v1056 = vsel %vm482, %v1043, %v995
  %v1057 = vsel %vm482, %v1045, %v997
  %v1058 = vsel %vm482, %v1047, %v999
  %v1059 = vsel %vm482, %v1049, %v1001
  %v1060 = vsel %vm482, %v1051, %v1003
  %v1061 = vsel %vm482, %v1053, %v1005
  %v1062 = vmul.f32 %v1054, %v540
  %v1063 = vmul.f32 %v1055, %v542
  %v1064 = vmul.f32 %v1056, %v544
  %v1065 = vmul.f32 %v1057, %v546
  %v1066 = vmul.f32 %v1058, %v548
  %v1067 = vmul.f32 %v1059, %v550
  %v1068 = vmul.f32 %v1060, %v552
  %v1069 = vmul.f32 %v1061, %v554
  %1078 = vrot.lane.b32.xlu0 %v1062, 32
  %v1079 = vpop.permute.xlu0 %1078
  %1080 = vrot.lane.b32.xlu0 %v1063, 32
  %v1081 = vpop.permute.xlu0 %1080
  %1082 = vrot.lane.b32.xlu0 %v1064, 32
  %v1083 = vpop.permute.xlu0 %1082
  %1084 = vrot.lane.b32.xlu0 %v1065, 32
  %v1085 = vpop.permute.xlu0 %1084
  %1086 = vrot.lane.b32.xlu0 %v1066, 32
  %v1087 = vpop.permute.xlu0 %1086
  %1088 = vrot.lane.b32.xlu0 %v1067, 32
  %v1089 = vpop.permute.xlu0 %1088
  %1090 = vrot.lane.b32.xlu0 %v1068, 32
  %v1091 = vpop.permute.xlu0 %1090
  %1092 = vrot.lane.b32.xlu0 %v1069, 32
  %v1093 = vpop.permute.xlu0 %1092
  %v1102 = vadd.f32 %v974, %v1079
  %v1103 = vadd.f32 %v975, %v1081
  %v1104 = vadd.f32 %v976, %v1083
  %v1105 = vadd.f32 %v977, %v1085
  %v1106 = vadd.f32 %v978, %v1087
  %v1107 = vadd.f32 %v979, %v1089
  %v1108 = vadd.f32 %v980, %v1091
  %v1109 = vadd.f32 %v981, %v1093
  %v1110 = vmul.f32 %v391, %v951
  %v1111 = vmul.f32 %v393, %v953
  %v1112 = vmul.f32 %v396, %v955
  %v1113 = vmul.f32 %v398, %v957
  %v1114 = vmul.f32 %v401, %v959
  %v1115 = vmul.f32 %v403, %v961
  %v1116 = vmul.f32 %v406, %v963
  %v1117 = vmul.f32 %v408, %v965
  %1126 = vrot.lane.b32.xlu0 %v391, 64
  %v1127 = vpop.permute.xlu0 %1126
  %1128 = vrot.lane.b32.xlu0 %v393, 64
  %v1129 = vpop.permute.xlu0 %1128
  %1130 = vrot.lane.b32.xlu0 %v396, 64
  %v1131 = vpop.permute.xlu0 %1130
  %1132 = vrot.lane.b32.xlu0 %v398, 64
  %v1133 = vpop.permute.xlu0 %1132
  %1134 = vrot.lane.b32.xlu0 %v401, 64
  %v1135 = vpop.permute.xlu0 %1134
  %1136 = vrot.lane.b32.xlu0 %v403, 64
  %v1137 = vpop.permute.xlu0 %1136
  %1138 = vrot.lane.b32.xlu0 %v406, 64
  %v1139 = vpop.permute.xlu0 %1138
  %1140 = vrot.lane.b32.xlu0 %v408, 64
  %v1141 = vpop.permute.xlu0 %1140
  %1150 = vrot.lane.b32.xlu0 %v1127, 64
  %v1151 = vpop.permute.xlu0 %1150
  %v1152 = vsel %vm482, %v1151, %v1127
  %1153 = vrot.lane.b32.xlu0 %v1129, 64
  %v1154 = vpop.permute.xlu0 %1153
  %v1155 = vsel %vm482, %v1154, %v1129
  %1156 = vrot.lane.b32.xlu0 %v1131, 64
  %v1157 = vpop.permute.xlu0 %1156
  %v1158 = vsel %vm482, %v1157, %v1131
  %1159 = vrot.lane.b32.xlu0 %v1133, 64
  %v1160 = vpop.permute.xlu0 %1159
  %v1161 = vsel %vm482, %v1160, %v1133
  %1162 = vrot.lane.b32.xlu0 %v1135, 64
  %v1163 = vpop.permute.xlu0 %1162
  %v1164 = vsel %vm482, %v1163, %v1135
  %1165 = vrot.lane.b32.xlu0 %v1137, 64
  %v1166 = vpop.permute.xlu0 %1165
  %v1167 = vsel %vm482, %v1166, %v1137
  %1168 = vrot.lane.b32.xlu0 %v1139, 64
  %v1169 = vpop.permute.xlu0 %1168
  %v1170 = vsel %vm482, %v1169, %v1139
  %1171 = vrot.lane.b32.xlu0 %v1141, 64
  %v1172 = vpop.permute.xlu0 %1171
  %v1173 = vsel %vm482, %v1172, %v1141
  %1174 = vrot.lane.b32.xlu0 %v1152, 64
  %v1175 = vpop.permute.xlu0 %1174
  %1176 = vrot.lane.b32.xlu0 %v1155, 64
  %v1177 = vpop.permute.xlu0 %1176
  %1178 = vrot.lane.b32.xlu0 %v1158, 64
  %v1179 = vpop.permute.xlu0 %1178
  %1180 = vrot.lane.b32.xlu0 %v1161, 64
  %v1181 = vpop.permute.xlu0 %1180
  %1182 = vrot.lane.b32.xlu0 %v1164, 64
  %v1183 = vpop.permute.xlu0 %1182
  %1184 = vrot.lane.b32.xlu0 %v1167, 64
  %v1185 = vpop.permute.xlu0 %1184
  %1186 = vrot.lane.b32.xlu0 %v1170, 64
  %v1187 = vpop.permute.xlu0 %1186
  %1188 = vrot.lane.b32.xlu0 %v1173, 64
  %v1189 = vpop.permute.xlu0 %1188
  %v1190 = vsel %vm482, %v1175, %v1127
  %v1191 = vsel %vm482, %v1177, %v1129
  %v1192 = vsel %vm482, %v1179, %v1131
  %v1193 = vsel %vm482, %v1181, %v1133
  %v1194 = vsel %vm482, %v1183, %v1135
  %v1195 = vsel %vm482, %v1185, %v1137
  %v1196 = vsel %vm482, %v1187, %v1139
  %v1197 = vsel %vm482, %v1189, %v1141
  %v1198 = vmul.f32 %v1190, %v540
  %v1199 = vmul.f32 %v1191, %v542
  %v1200 = vmul.f32 %v1192, %v544
  %v1201 = vmul.f32 %v1193, %v546
  %v1202 = vmul.f32 %v1194, %v548
  %v1203 = vmul.f32 %v1195, %v550
  %v1204 = vmul.f32 %v1196, %v552
  %v1205 = vmul.f32 %v1197, %v554
  %1214 = vrot.lane.b32.xlu0 %v1198, 32
  %v1215 = vpop.permute.xlu0 %1214
  %1216 = vrot.lane.b32.xlu0 %v1199, 32
  %v1217 = vpop.permute.xlu0 %1216
  %1218 = vrot.lane.b32.xlu0 %v1200, 32
  %v1219 = vpop.permute.xlu0 %1218
  %1220 = vrot.lane.b32.xlu0 %v1201, 32
  %v1221 = vpop.permute.xlu0 %1220
  %1222 = vrot.lane.b32.xlu0 %v1202, 32
  %v1223 = vpop.permute.xlu0 %1222
  %1224 = vrot.lane.b32.xlu0 %v1203, 32
  %v1225 = vpop.permute.xlu0 %1224
  %1226 = vrot.lane.b32.xlu0 %v1204, 32
  %v1227 = vpop.permute.xlu0 %1226
  %1228 = vrot.lane.b32.xlu0 %v1205, 32
  %v1229 = vpop.permute.xlu0 %1228
  %v1238 = vadd.f32 %v1110, %v1215
  %v1239 = vadd.f32 %v1111, %v1217
  %v1240 = vadd.f32 %v1112, %v1219
  %v1241 = vadd.f32 %v1113, %v1221
  %v1242 = vadd.f32 %v1114, %v1223
  %v1243 = vadd.f32 %v1115, %v1225
  %v1244 = vadd.f32 %v1116, %v1227
  %v1245 = vadd.f32 %v1117, %v1229
  %v1246 = vpack.c.bf16 %v1103, %v1102
  %v1247 = vpack.c.bf16 %v1105, %v1104
  %v1248 = vpack.c.bf16 %v1107, %v1106
  %v1249 = vpack.c.bf16 %v1109, %v1108
  %v1250 = vpack.c.bf16 %v1239, %v1238
  %v1251 = vpack.c.bf16 %v1241, %v1240
  %v1252 = vpack.c.bf16 %v1243, %v1242
  %v1253 = vpack.c.bf16 %v1245, %v1244
  %1258 = vrot.lane.b32.xlu0 %v1246, 64
  %v1259 = vpop.permute.xlu0 %1258
  %1260 = vrot.lane.b32.xlu0 %v1247, 64
  %v1261 = vpop.permute.xlu0 %1260
  %1262 = vrot.lane.b32.xlu0 %v1248, 64
  %v1263 = vpop.permute.xlu0 %1262
  %1264 = vrot.lane.b32.xlu0 %v1249, 64
  %v1265 = vpop.permute.xlu0 %1264
  %1270 = vrot.lane.b32.xlu0 %v1250, 64
  %v1271 = vpop.permute.xlu0 %1270
  %1272 = vrot.lane.b32.xlu0 %v1251, 64
  %v1273 = vpop.permute.xlu0 %1272
  %1274 = vrot.lane.b32.xlu0 %v1252, 64
  %v1275 = vpop.permute.xlu0 %1274
  %1276 = vrot.lane.b32.xlu0 %v1253, 64
  %v1277 = vpop.permute.xlu0 %1276
  %v1279 = vsel %vm723, %v1259, 0
  %v1282 = vsel %vm723, %v1261, 0
  %v1285 = vsel %vm723, %v1263, 0
  %v1288 = vsel %vm723, %v1265, 0
  %v1291 = vsel %vm723, %v1271, 0
  %v1294 = vsel %vm723, %v1273, 0
  %v1297 = vsel %vm723, %v1275, 0
  %v1300 = vsel %vm723, %v1277, 0
  %1302 = vmatpush.bf16.xpose.msra.mxu0 0
  %1303 = vmatpush.bf16.xpose.msra.mxu0 0
  %1304 = vmatpush.bf16.xpose.msra.mxu0 0
  %1305 = vmatpush.bf16.xpose.msra.mxu0 0
  %1306 = vmatpush.bf16.xpose.msra.mxu0 %v1300
  %1307 = vmatpush.bf16.xpose.msra.mxu0 %v1297
  %1308 = vmatpush.bf16.xpose.msra.mxu0 %v1294
  %1309 = vmatpush.bf16.xpose.msra.mxu0 %v1291
  %1310 = vmatmul.bf16.gmra.mxu0 %v1279
  %v1311 = vpop.f32.mrf.mxu0
  %v1312 = vadd.f32 0.0, %v1311
  %v1313 = vpop.f32.mrf.mxu0
  %v1314 = vadd.f32 0.0, %v1313
  %1315 = vmatmul.bf16.gmra.mxu0 %v1282
  %v1316 = vpop.f32.mrf.mxu0
  %v1317 = vadd.f32 0.0, %v1316
  %v1318 = vpop.f32.mrf.mxu0
  %v1319 = vadd.f32 0.0, %v1318
  %1320 = vmatmul.bf16.gmra.mxu0 %v1285
  %v1321 = vpop.f32.mrf.mxu0
  %v1322 = vadd.f32 0.0, %v1321
  %v1323 = vpop.f32.mrf.mxu0
  %v1324 = vadd.f32 0.0, %v1323
  %1325 = vmatmul.bf16.gmra.mxu0 %v1288
  %v1326 = vpop.f32.mrf.mxu0
  %v1327 = vadd.f32 0.0, %v1326
  %v1328 = vpop.f32.mrf.mxu0
  %v1329 = vadd.f32 0.0, %v1328
  %1330 = vdwg.mxu0
  %v1331 = vmul.f32 %v1312, 0.125
  %v1332 = vmul.f32 %v1314, 0.125
  %v1333 = vmul.f32 %v1317, 0.125
  %v1334 = vmul.f32 %v1319, 0.125
  %v1335 = vmul.f32 %v1322, 0.125
  %v1336 = vmul.f32 %v1324, 0.125
  %v1337 = vmul.f32 %v1327, 0.125
  %v1338 = vmul.f32 %v1329, 0.125
  %v1339 = vsel %vm466, %v1331, -inf
  %v1340 = vsel %vm467, %v1332, -inf
  %v1341 = vsel %vm468, %v1333, -inf
  %v1342 = vsel %vm469, %v1334, -inf
  %v1343 = vsel %vm470, %v1335, -inf
  %v1344 = vsel %vm471, %v1336, -inf
  %v1345 = vsel %vm472, %v1337, -inf
  %v1346 = vsel %vm473, %v1338, -inf
  %v1347 = vsel %vm723, %v1339, -inf
  %1348 = vmax.xlane.f32.xlu0 %v1347
  %v1349 = vpop.xlane.xlu0 %1348
  %v1350 = vsel %vm723, %v1340, -inf
  %1351 = vmax.xlane.f32.xlu0 %v1350
  %v1352 = vpop.xlane.xlu0 %1351
  %v1353 = vsel %vm723, %v1341, -inf
  %1354 = vmax.xlane.f32.xlu0 %v1353
  %v1355 = vpop.xlane.xlu0 %1354
  %v1356 = vsel %vm723, %v1342, -inf
  %1357 = vmax.xlane.f32.xlu0 %v1356
  %v1358 = vpop.xlane.xlu0 %1357
  %v1359 = vsel %vm723, %v1343, -inf
  %1360 = vmax.xlane.f32.xlu0 %v1359
  %v1361 = vpop.xlane.xlu0 %1360
  %v1362 = vsel %vm723, %v1344, -inf
  %1363 = vmax.xlane.f32.xlu0 %v1362
  %v1364 = vpop.xlane.xlu0 %1363
  %v1365 = vsel %vm723, %v1345, -inf
  %1366 = vmax.xlane.f32.xlu0 %v1365
  %v1367 = vpop.xlane.xlu0 %1366
  %v1368 = vsel %vm723, %v1346, -inf
  %1369 = vmax.xlane.f32.xlu0 %v1368
  %v1370 = vpop.xlane.xlu0 %1369
  %v1371 = vsub.f32 %v1339, %v1349
  %v1372 = vsub.f32 %v1340, %v1352
  %v1373 = vsub.f32 %v1341, %v1355
  %v1374 = vsub.f32 %v1342, %v1358
  %v1375 = vsub.f32 %v1343, %v1361
  %v1376 = vsub.f32 %v1344, %v1364
  %v1377 = vsub.f32 %v1345, %v1367
  %v1378 = vsub.f32 %v1346, %v1370
  %v1379 = vmul.f32 %v1371, 1.442695
  %v1380 = vpow.pop %v1379
  %v1381 = vmul.f32 %v1372, 1.442695
  %v1382 = vpow.pop %v1381
  %v1383 = vmul.f32 %v1373, 1.442695
  %v1384 = vpow.pop %v1383
  %v1385 = vmul.f32 %v1374, 1.442695
  %v1386 = vpow.pop %v1385
  %v1387 = vmul.f32 %v1375, 1.442695
  %v1388 = vpow.pop %v1387
  %v1389 = vmul.f32 %v1376, 1.442695
  %v1390 = vpow.pop %v1389
  %v1391 = vmul.f32 %v1377, 1.442695
  %v1392 = vpow.pop %v1391
  %v1393 = vmul.f32 %v1378, 1.442695
  %v1394 = vpow.pop %v1393
  %v1395 = vsel %vm723, %v1380, 0.0
  %1396 = vadd.xlane.f32.xlu0 %v1395
  %v1397 = vpop.xlane.xlu0 %1396
  %v1398 = vsel %vm723, %v1382, 0.0
  %1399 = vadd.xlane.f32.xlu0 %v1398
  %v1400 = vpop.xlane.xlu0 %1399
  %v1401 = vsel %vm723, %v1384, 0.0
  %1402 = vadd.xlane.f32.xlu0 %v1401
  %v1403 = vpop.xlane.xlu0 %1402
  %v1404 = vsel %vm723, %v1386, 0.0
  %1405 = vadd.xlane.f32.xlu0 %v1404
  %v1406 = vpop.xlane.xlu0 %1405
  %v1407 = vsel %vm723, %v1388, 0.0
  %1408 = vadd.xlane.f32.xlu0 %v1407
  %v1409 = vpop.xlane.xlu0 %1408
  %v1410 = vsel %vm723, %v1390, 0.0
  %1411 = vadd.xlane.f32.xlu0 %v1410
  %v1412 = vpop.xlane.xlu0 %1411
  %v1413 = vsel %vm723, %v1392, 0.0
  %1414 = vadd.xlane.f32.xlu0 %v1413
  %v1415 = vpop.xlane.xlu0 %1414
  %v1416 = vsel %vm723, %v1394, 0.0
  %1417 = vadd.xlane.f32.xlu0 %v1416
  %v1418 = vpop.xlane.xlu0 %1417
  %v1419 = vrcp.pop %v1397
  %v1420 = vrcp.pop %v1400
  %v1421 = vrcp.pop %v1403
  %v1422 = vrcp.pop %v1406
  %v1423 = vrcp.pop %v1409
  %v1424 = vrcp.pop %v1412
  %v1425 = vrcp.pop %v1415
  %v1426 = vrcp.pop %v1418
  %v1427 = vmul.f32 %v1380, %v1419
  %v1428 = vmul.f32 %v1382, %v1420
  %v1429 = vmul.f32 %v1384, %v1421
  %v1430 = vmul.f32 %v1386, %v1422
  %v1431 = vmul.f32 %v1388, %v1423
  %v1432 = vmul.f32 %v1390, %v1424
  %v1433 = vmul.f32 %v1392, %v1425
  %v1434 = vmul.f32 %v1394, %v1426
  %v1435 = vpack.c.bf16 %v1428, %v1427
  %v1436 = vpack.c.bf16 %v1430, %v1429
  %v1437 = vpack.c.bf16 %v1432, %v1431
  %v1438 = vpack.c.bf16 %v1434, %v1433
  %1443 = vrot.lane.b32.xlu0 %v885, 64
  %v1444 = vpop.permute.xlu0 %1443
  %1445 = vrot.lane.b32.xlu0 %v886, 64
  %v1446 = vpop.permute.xlu0 %1445
  %1447 = vrot.lane.b32.xlu0 %v887, 64
  %v1448 = vpop.permute.xlu0 %1447
  %1449 = vrot.lane.b32.xlu0 %v888, 64
  %v1450 = vpop.permute.xlu0 %1449
  %v1456 = vsel %vm723, %v1435, 0
  %v1459 = vsel %vm723, %v1436, 0
  %v1462 = vsel %vm723, %v1437, 0
  %v1465 = vsel %vm723, %v1438, 0
  %1467 = vmatpush.bf16.msra.mxu0 0
  %1468 = vmatpush.bf16.msra.mxu0 0
  %1469 = vmatpush.bf16.msra.mxu0 0
  %1470 = vmatpush.bf16.msra.mxu0 0
  %1471 = vmatpush.bf16.msra.mxu0 %v1450
  %1472 = vmatpush.bf16.msra.mxu0 %v1448
  %1473 = vmatpush.bf16.msra.mxu0 %v1446
  %1474 = vmatpush.bf16.msra.mxu0 %v1444
  %1475 = vmatmul.bf16.gmra.mxu0 %v1456
  %v1476 = vpop.f32.mrf.mxu0
  %v1477 = vadd.f32 0.0, %v1476
  %v1478 = vpop.f32.mrf.mxu0
  %v1479 = vadd.f32 0.0, %v1478
  %1480 = vmatmul.bf16.gmra.mxu0 %v1459
  %v1481 = vpop.f32.mrf.mxu0
  %v1482 = vadd.f32 0.0, %v1481
  %v1483 = vpop.f32.mrf.mxu0
  %v1484 = vadd.f32 0.0, %v1483
  %1485 = vmatmul.bf16.gmra.mxu0 %v1462
  %v1486 = vpop.f32.mrf.mxu0
  %v1487 = vadd.f32 0.0, %v1486
  %v1488 = vpop.f32.mrf.mxu0
  %v1489 = vadd.f32 0.0, %v1488
  %1490 = vmatmul.bf16.gmra.mxu0 %v1465
  %v1491 = vpop.f32.mrf.mxu0
  %v1492 = vadd.f32 0.0, %v1491
  %v1493 = vpop.f32.mrf.mxu0
  %v1494 = vadd.f32 0.0, %v1493
  %1495 = vdwg.mxu0
  %v1496 = vpack.c.bf16 %v1479, %v1477
  %v1497 = vpack.c.bf16 %v1484, %v1482
  %v1498 = vpack.c.bf16 %v1489, %v1487
  %v1499 = vpack.c.bf16 %v1494, %v1492
  %v1500 = vld [vmem:[%s4 + $0x20] sm:$0xf]
  %v1501 = vld [vmem:[%s4 + $0x24] sm:$0xf]
  %v1502 = vld [vmem:[%s4 + $0x28] sm:$0xf]
  %v1503 = vld [vmem:[%s4 + $0x2c] sm:$0xf]
  %v1504 = vld [vmem:[%s4 + $0x30] sm:$0xf]
  %v1505 = vld [vmem:[%s4 + $0x34] sm:$0xf]
  %v1506 = vld [vmem:[%s4 + $0x38] sm:$0xf]
  %v1507 = vld [vmem:[%s4 + $0x3c] sm:$0xf]
  %v1516 = vunpack.c.l.b16 %v1500
  %v1517 = vunpack.c.l.b16 %v1501
  %v1518 = vunpack.c.l.b16 %v1502
  %v1519 = vunpack.c.l.b16 %v1503
  %v1520 = vunpack.c.l.b16 %v1504
  %v1521 = vunpack.c.l.b16 %v1505
  %v1522 = vunpack.c.l.b16 %v1506
  %v1523 = vunpack.c.l.b16 %v1507
  %v1524 = vpack.c.b16 %v1517, %v1516
  %v1525 = vpack.c.b16 %v1519, %v1518
  %v1526 = vpack.c.b16 %v1521, %v1520
  %v1527 = vpack.c.b16 %v1523, %v1522
  %v1533 = vsel %vm723, %v1496, 0
  %v1536 = vsel %vm723, %v1497, 0
  %v1539 = vsel %vm723, %v1498, 0
  %v1542 = vsel %vm723, %v1499, 0
  %1544 = vmatpush.bf16.msra.mxu0 0
  %1545 = vmatpush.bf16.msra.mxu0 0
  %1546 = vmatpush.bf16.msra.mxu0 0
  %1547 = vmatpush.bf16.msra.mxu0 0
  %1548 = vmatpush.bf16.msra.mxu0 %v1527
  %1549 = vmatpush.bf16.msra.mxu0 %v1526
  %1550 = vmatpush.bf16.msra.mxu0 %v1525
  %1551 = vmatpush.bf16.msra.mxu0 %v1524
  %1552 = vmatmul.bf16.gmra.mxu0 %v1533
  %v1553 = vpop.f32.mrf.mxu0
  %v1554 = vadd.f32 0.0, %v1553
  %v1555 = vpop.f32.mrf.mxu0
  %v1556 = vadd.f32 0.0, %v1555
  %1557 = vmatmul.bf16.gmra.mxu0 %v1536
  %v1558 = vpop.f32.mrf.mxu0
  %v1559 = vadd.f32 0.0, %v1558
  %v1560 = vpop.f32.mrf.mxu0
  %v1561 = vadd.f32 0.0, %v1560
  %1562 = vmatmul.bf16.gmra.mxu0 %v1539
  %v1563 = vpop.f32.mrf.mxu0
  %v1564 = vadd.f32 0.0, %v1563
  %v1565 = vpop.f32.mrf.mxu0
  %v1566 = vadd.f32 0.0, %v1565
  %1567 = vmatmul.bf16.gmra.mxu0 %v1542
  %v1568 = vpop.f32.mrf.mxu0
  %v1569 = vadd.f32 0.0, %v1568
  %v1570 = vpop.f32.mrf.mxu0
  %v1571 = vadd.f32 0.0, %v1570
  %1572 = vdwg.mxu0
  %v1581 = vunpack.c.l.b16 %v934
  %v1582 = vunpack.c.l.b16 %v935
  %v1583 = vunpack.c.l.b16 %v936
  %v1584 = vunpack.c.l.b16 %v937
  %v1585 = vunpack.c.l.b16 %v938
  %v1586 = vunpack.c.l.b16 %v939
  %v1587 = vunpack.c.l.b16 %v940
  %v1588 = vunpack.c.l.b16 %v941
  %v1589 = vpack.c.b16 %v1582, %v1581
  %v1590 = vpack.c.b16 %v1584, %v1583
  %v1591 = vpack.c.b16 %v1586, %v1585
  %v1592 = vpack.c.b16 %v1588, %v1587
  %v1598 = vsel %vm723, %v930, 0
  %v1601 = vsel %vm723, %v931, 0
  %v1604 = vsel %vm723, %v932, 0
  %v1607 = vsel %vm723, %v933, 0
  %1609 = vmatpush.bf16.msra.mxu0 0
  %1610 = vmatpush.bf16.msra.mxu0 0
  %1611 = vmatpush.bf16.msra.mxu0 0
  %1612 = vmatpush.bf16.msra.mxu0 0
  %1613 = vmatpush.bf16.msra.mxu0 %v1592
  %1614 = vmatpush.bf16.msra.mxu0 %v1591
  %1615 = vmatpush.bf16.msra.mxu0 %v1590
  %1616 = vmatpush.bf16.msra.mxu0 %v1589
  %1617 = vmatmul.bf16.gmra.mxu0 %v1598
  %v1618 = vpop.f32.mrf.mxu0
  %v1619 = vadd.f32 %v1554, %v1618
  %v1620 = vpop.f32.mrf.mxu0
  %v1621 = vadd.f32 %v1556, %v1620
  %1622 = vmatmul.bf16.gmra.mxu0 %v1601
  %v1623 = vpop.f32.mrf.mxu0
  %v1624 = vadd.f32 %v1559, %v1623
  %v1625 = vpop.f32.mrf.mxu0
  %v1626 = vadd.f32 %v1561, %v1625
  %1627 = vmatmul.bf16.gmra.mxu0 %v1604
  %v1628 = vpop.f32.mrf.mxu0
  %v1629 = vadd.f32 %v1564, %v1628
  %v1630 = vpop.f32.mrf.mxu0
  %v1631 = vadd.f32 %v1566, %v1630
  %1632 = vmatmul.bf16.gmra.mxu0 %v1607
  %v1633 = vpop.f32.mrf.mxu0
  %v1634 = vadd.f32 %v1569, %v1633
  %v1635 = vpop.f32.mrf.mxu0
  %v1636 = vadd.f32 %v1571, %v1635
  %1637 = vdwg.mxu0
  %v1638 = vadd.f32 %v33, %v1619
  %v1639 = vadd.f32 %v34, %v1621
  %v1640 = vadd.f32 %v35, %v1624
  %v1641 = vadd.f32 %v36, %v1626
  %v1642 = vadd.f32 %v37, %v1629
  %v1643 = vadd.f32 %v38, %v1631
  %v1644 = vadd.f32 %v39, %v1634
  %v1645 = vadd.f32 %v40, %v1636
  %v1646 = vld [vmem:[%s2] sm:$0x1]
  %v1647 = vmul.f32 %v1638, %v1638
  %v1648 = vmul.f32 %v1639, %v1639
  %v1649 = vmul.f32 %v1640, %v1640
  %v1650 = vmul.f32 %v1641, %v1641
  %v1651 = vmul.f32 %v1642, %v1642
  %v1652 = vmul.f32 %v1643, %v1643
  %v1653 = vmul.f32 %v1644, %v1644
  %v1654 = vmul.f32 %v1645, %v1645
  %1655 = vadd.xlane.f32.xlu0 %v1647
  %v1656 = vpop.xlane.xlu0 %1655
  %1657 = vadd.xlane.f32.xlu0 %v1648
  %v1658 = vpop.xlane.xlu0 %1657
  %1659 = vadd.xlane.f32.xlu0 %v1649
  %v1660 = vpop.xlane.xlu0 %1659
  %1661 = vadd.xlane.f32.xlu0 %v1650
  %v1662 = vpop.xlane.xlu0 %1661
  %1663 = vadd.xlane.f32.xlu0 %v1651
  %v1664 = vpop.xlane.xlu0 %1663
  %1665 = vadd.xlane.f32.xlu0 %v1652
  %v1666 = vpop.xlane.xlu0 %1665
  %1667 = vadd.xlane.f32.xlu0 %v1653
  %v1668 = vpop.xlane.xlu0 %1667
  %1669 = vadd.xlane.f32.xlu0 %v1654
  %v1670 = vpop.xlane.xlu0 %1669
  %v1671 = vmul.f32 %v1656, %v72
  %v1672 = vmul.f32 %v1658, %v72
  %v1673 = vmul.f32 %v1660, %v72
  %v1674 = vmul.f32 %v1662, %v72
  %v1675 = vmul.f32 %v1664, %v72
  %v1676 = vmul.f32 %v1666, %v72
  %v1677 = vmul.f32 %v1668, %v72
  %v1678 = vmul.f32 %v1670, %v72
  %v1679 = vadd.f32 %v1671, 1e-05
  %v1680 = vadd.f32 %v1672, 1e-05
  %v1681 = vadd.f32 %v1673, 1e-05
  %v1682 = vadd.f32 %v1674, 1e-05
  %v1683 = vadd.f32 %v1675, 1e-05
  %v1684 = vadd.f32 %v1676, 1e-05
  %v1685 = vadd.f32 %v1677, 1e-05
  %v1686 = vadd.f32 %v1678, 1e-05
  %v1687 = vrsqrt.pop %v1679
  %v1688 = vmul.f32 %v1687, %v1679
  %v1689 = vmul.f32 %v1688, %v1687
  %v1690 = vmul.f32 0.5, %v1689
  %v1691 = vsub.f32 1.5, %v1690
  %v1692 = vmul.f32 %v1687, %v1691
  %vm1693 = vweird.f32 %v1679
  %vm1694 = vweird.f32 %v1687
  %vm1695 = vmor %vm1693, %vm1694
  %v1696 = vsel %vm1695, %v1687, %v1692
  %v1697 = vrsqrt.pop %v1680
  %v1698 = vmul.f32 %v1697, %v1680
  %v1699 = vmul.f32 %v1698, %v1697
  %v1700 = vmul.f32 0.5, %v1699
  %v1701 = vsub.f32 1.5, %v1700
  %v1702 = vmul.f32 %v1697, %v1701
  %vm1703 = vweird.f32 %v1680
  %vm1704 = vweird.f32 %v1697
  %vm1705 = vmor %vm1703, %vm1704
  %v1706 = vsel %vm1705, %v1697, %v1702
  %v1707 = vrsqrt.pop %v1681
  %v1708 = vmul.f32 %v1707, %v1681
  %v1709 = vmul.f32 %v1708, %v1707
  %v1710 = vmul.f32 0.5, %v1709
  %v1711 = vsub.f32 1.5, %v1710
  %v1712 = vmul.f32 %v1707, %v1711
  %vm1713 = vweird.f32 %v1681
  %vm1714 = vweird.f32 %v1707
  %vm1715 = vmor %vm1713, %vm1714
  %v1716 = vsel %vm1715, %v1707, %v1712
  %v1717 = vrsqrt.pop %v1682
  %v1718 = vmul.f32 %v1717, %v1682
  %v1719 = vmul.f32 %v1718, %v1717
  %v1720 = vmul.f32 0.5, %v1719
  %v1721 = vsub.f32 1.5, %v1720
  %v1722 = vmul.f32 %v1717, %v1721
  %vm1723 = vweird.f32 %v1682
  %vm1724 = vweird.f32 %v1717
  %vm1725 = vmor %vm1723, %vm1724
  %v1726 = vsel %vm1725, %v1717, %v1722
  %v1727 = vrsqrt.pop %v1683
  %v1728 = vmul.f32 %v1727, %v1683
  %v1729 = vmul.f32 %v1728, %v1727
  %v1730 = vmul.f32 0.5, %v1729
  %v1731 = vsub.f32 1.5, %v1730
  %v1732 = vmul.f32 %v1727, %v1731
  %vm1733 = vweird.f32 %v1683
  %vm1734 = vweird.f32 %v1727
  %vm1735 = vmor %vm1733, %vm1734
  %v1736 = vsel %vm1735, %v1727, %v1732
  %v1737 = vrsqrt.pop %v1684
  %v1738 = vmul.f32 %v1737, %v1684
  %v1739 = vmul.f32 %v1738, %v1737
  %v1740 = vmul.f32 0.5, %v1739
  %v1741 = vsub.f32 1.5, %v1740
  %v1742 = vmul.f32 %v1737, %v1741
  %vm1743 = vweird.f32 %v1684
  %vm1744 = vweird.f32 %v1737
  %vm1745 = vmor %vm1743, %vm1744
  %v1746 = vsel %vm1745, %v1737, %v1742
  %v1747 = vrsqrt.pop %v1685
  %v1748 = vmul.f32 %v1747, %v1685
  %v1749 = vmul.f32 %v1748, %v1747
  %v1750 = vmul.f32 0.5, %v1749
  %v1751 = vsub.f32 1.5, %v1750
  %v1752 = vmul.f32 %v1747, %v1751
  %vm1753 = vweird.f32 %v1685
  %vm1754 = vweird.f32 %v1747
  %vm1755 = vmor %vm1753, %vm1754
  %v1756 = vsel %vm1755, %v1747, %v1752
  %v1757 = vrsqrt.pop %v1686
  %v1758 = vmul.f32 %v1757, %v1686
  %v1759 = vmul.f32 %v1758, %v1757
  %v1760 = vmul.f32 0.5, %v1759
  %v1761 = vsub.f32 1.5, %v1760
  %v1762 = vmul.f32 %v1757, %v1761
  %vm1763 = vweird.f32 %v1686
  %vm1764 = vweird.f32 %v1757
  %vm1765 = vmor %vm1763, %vm1764
  %v1766 = vsel %vm1765, %v1757, %v1762
  %v1767 = vmul.f32 %v1638, %v1696
  %v1768 = vmul.f32 %v1639, %v1706
  %v1769 = vmul.f32 %v1640, %v1716
  %v1770 = vmul.f32 %v1641, %v1726
  %v1771 = vmul.f32 %v1642, %v1736
  %v1772 = vmul.f32 %v1643, %v1746
  %v1773 = vmul.f32 %v1644, %v1756
  %v1774 = vmul.f32 %v1645, %v1766
  %v1776 = vperm.slane %v1646, 0
  %v1778 = vmul.f32 %v1767, %v1776
  %v1779 = vmul.f32 %v1768, %v1776
  %v1780 = vmul.f32 %v1769, %v1776
  %v1781 = vmul.f32 %v1770, %v1776
  %v1782 = vmul.f32 %v1771, %v1776
  %v1783 = vmul.f32 %v1772, %v1776
  %v1784 = vmul.f32 %v1773, %v1776
  %v1785 = vmul.f32 %v1774, %v1776
  %v1786 = vpack.c.bf16 %v1779, %v1778
  %v1787 = vpack.c.bf16 %v1781, %v1780
  %v1788 = vpack.c.bf16 %v1783, %v1782
  %v1789 = vpack.c.bf16 %v1785, %v1784
  %v1790 = vld [vmem:[%s5] sm:$0xff]
  %v1791 = vld [vmem:[%s5 + $0x8] sm:$0xff]
  %v1792 = vld [vmem:[%s5 + $0x10] sm:$0xff]
  %v1793 = vld [vmem:[%s5 + $0x18] sm:$0xff]
  %v1794 = vld [vmem:[%s5 + $0x20] sm:$0xff]
  %v1795 = vld [vmem:[%s5 + $0x28] sm:$0xff]
  %v1796 = vld [vmem:[%s5 + $0x30] sm:$0xff]
  %v1797 = vld [vmem:[%s5 + $0x38] sm:$0xff]
  %v1798 = vld [vmem:[%s5 + $0x40] sm:$0xff]
  %v1799 = vld [vmem:[%s5 + $0x48] sm:$0xff]
  %v1800 = vld [vmem:[%s5 + $0x50] sm:$0xff]
  %v1801 = vld [vmem:[%s5 + $0x58] sm:$0xff]
  %v1802 = vld [vmem:[%s5 + $0x60] sm:$0xff]
  %v1803 = vld [vmem:[%s5 + $0x68] sm:$0xff]
  %v1804 = vld [vmem:[%s5 + $0x70] sm:$0xff]
  %v1805 = vld [vmem:[%s5 + $0x78] sm:$0xff]
  %v1806 = vld [vmem:[%s5 + $0x80] sm:$0xff]
  %v1807 = vld [vmem:[%s5 + $0x88] sm:$0xff]
  %v1808 = vld [vmem:[%s5 + $0x90] sm:$0xff]
  %v1809 = vld [vmem:[%s5 + $0x98] sm:$0xff]
  %v1810 = vld [vmem:[%s5 + $0xa0] sm:$0xff]
  %v1811 = vld [vmem:[%s5 + $0xa8] sm:$0xff]
  %v1812 = vld [vmem:[%s5 + $0xb0] sm:$0xff]
  %v1813 = vld [vmem:[%s5 + $0xb8] sm:$0xff]
  %v1814 = vld [vmem:[%s5 + $0xc0] sm:$0xff]
  %v1815 = vld [vmem:[%s5 + $0xc8] sm:$0xff]
  %v1816 = vld [vmem:[%s5 + $0xd0] sm:$0xff]
  %v1817 = vld [vmem:[%s5 + $0xd8] sm:$0xff]
  %v1818 = vld [vmem:[%s5 + $0xe0] sm:$0xff]
  %v1819 = vld [vmem:[%s5 + $0xe8] sm:$0xff]
  %v1820 = vld [vmem:[%s5 + $0xf0] sm:$0xff]
  %v1821 = vld [vmem:[%s5 + $0xf8] sm:$0xff]
  %v1854 = vunpack.c.l.b16 %v1790
  %v1855 = vunpack.c.h.b16 %v1790
  %v1856 = vunpack.c.l.b16 %v1791
  %v1857 = vunpack.c.h.b16 %v1791
  %v1858 = vunpack.c.l.b16 %v1792
  %v1859 = vunpack.c.h.b16 %v1792
  %v1860 = vunpack.c.l.b16 %v1793
  %v1861 = vunpack.c.h.b16 %v1793
  %v1862 = vunpack.c.l.b16 %v1794
  %v1863 = vunpack.c.h.b16 %v1794
  %v1864 = vunpack.c.l.b16 %v1795
  %v1865 = vunpack.c.h.b16 %v1795
  %v1866 = vunpack.c.l.b16 %v1796
  %v1867 = vunpack.c.h.b16 %v1796
  %v1868 = vunpack.c.l.b16 %v1797
  %v1869 = vunpack.c.h.b16 %v1797
  %v1870 = vunpack.c.l.b16 %v1798
  %v1871 = vunpack.c.h.b16 %v1798
  %v1872 = vunpack.c.l.b16 %v1799
  %v1873 = vunpack.c.h.b16 %v1799
  %v1874 = vunpack.c.l.b16 %v1800
  %v1875 = vunpack.c.h.b16 %v1800
  %v1876 = vunpack.c.l.b16 %v1801
  %v1877 = vunpack.c.h.b16 %v1801
  %v1878 = vunpack.c.l.b16 %v1802
  %v1879 = vunpack.c.h.b16 %v1802
  %v1880 = vunpack.c.l.b16 %v1803
  %v1881 = vunpack.c.h.b16 %v1803
  %v1882 = vunpack.c.l.b16 %v1804
  %v1883 = vunpack.c.h.b16 %v1804
  %v1884 = vunpack.c.l.b16 %v1805
  %v1885 = vunpack.c.h.b16 %v1805
  %v1886 = vunpack.c.l.b16 %v1806
  %v1887 = vunpack.c.h.b16 %v1806
  %v1888 = vunpack.c.l.b16 %v1807
  %v1889 = vunpack.c.h.b16 %v1807
  %v1890 = vunpack.c.l.b16 %v1808
  %v1891 = vunpack.c.h.b16 %v1808
  %v1892 = vunpack.c.l.b16 %v1809
  %v1893 = vunpack.c.h.b16 %v1809
  %v1894 = vunpack.c.l.b16 %v1810
  %v1895 = vunpack.c.h.b16 %v1810
  %v1896 = vunpack.c.l.b16 %v1811
  %v1897 = vunpack.c.h.b16 %v1811
  %v1898 = vunpack.c.l.b16 %v1812
  %v1899 = vunpack.c.h.b16 %v1812
  %v1900 = vunpack.c.l.b16 %v1813
  %v1901 = vunpack.c.h.b16 %v1813
  %v1902 = vunpack.c.l.b16 %v1814
  %v1903 = vunpack.c.h.b16 %v1814
  %v1904 = vunpack.c.l.b16 %v1815
  %v1905 = vunpack.c.h.b16 %v1815
  %v1906 = vunpack.c.l.b16 %v1816
  %v1907 = vunpack.c.h.b16 %v1816
  %v1908 = vunpack.c.l.b16 %v1817
  %v1909 = vunpack.c.h.b16 %v1817
  %v1910 = vunpack.c.l.b16 %v1818
  %v1911 = vunpack.c.h.b16 %v1818
  %v1912 = vunpack.c.l.b16 %v1819
  %v1913 = vunpack.c.h.b16 %v1819
  %v1914 = vunpack.c.l.b16 %v1820
  %v1915 = vunpack.c.h.b16 %v1820
  %v1916 = vunpack.c.l.b16 %v1821
  %v1917 = vunpack.c.h.b16 %v1821
  %v1918 = vpack.c.b16 %v1858, %v1854
  %v1919 = vpack.c.b16 %v1859, %v1855
  %v1920 = vpack.c.b16 %v1860, %v1856
  %v1921 = vpack.c.b16 %v1861, %v1857
  %v1922 = vpack.c.b16 %v1866, %v1862
  %v1923 = vpack.c.b16 %v1867, %v1863
  %v1924 = vpack.c.b16 %v1868, %v1864
  %v1925 = vpack.c.b16 %v1869, %v1865
  %v1926 = vpack.c.b16 %v1874, %v1870
  %v1927 = vpack.c.b16 %v1875, %v1871
  %v1928 = vpack.c.b16 %v1876, %v1872
  %v1929 = vpack.c.b16 %v1877, %v1873
  %v1930 = vpack.c.b16 %v1882, %v1878
  %v1931 = vpack.c.b16 %v1883, %v1879
  %v1932 = vpack.c.b16 %v1884, %v1880
  %v1933 = vpack.c.b16 %v1885, %v1881
  %v1934 = vpack.c.b16 %v1890, %v1886
  %v1935 = vpack.c.b16 %v1891, %v1887
  %v1936 = vpack.c.b16 %v1892, %v1888
  %v1937 = vpack.c.b16 %v1893, %v1889
  %v1938 = vpack.c.b16 %v1898, %v1894
  %v1939 = vpack.c.b16 %v1899, %v1895
  %v1940 = vpack.c.b16 %v1900, %v1896
  %v1941 = vpack.c.b16 %v1901, %v1897
  %v1942 = vpack.c.b16 %v1906, %v1902
  %v1943 = vpack.c.b16 %v1907, %v1903
  %v1944 = vpack.c.b16 %v1908, %v1904
  %v1945 = vpack.c.b16 %v1909, %v1905
  %v1946 = vpack.c.b16 %v1914, %v1910
  %v1947 = vpack.c.b16 %v1915, %v1911
  %v1948 = vpack.c.b16 %v1916, %v1912
  %v1949 = vpack.c.b16 %v1917, %v1913
  %1982 = vmatpush.bf16.msra.mxu0 %v1946
  %1983 = vmatpush.bf16.msra.mxu0 %v1942
  %1984 = vmatpush.bf16.msra.mxu0 %v1938
  %1985 = vmatpush.bf16.msra.mxu0 %v1934
  %1986 = vmatpush.bf16.msra.mxu0 %v1930
  %1987 = vmatpush.bf16.msra.mxu0 %v1926
  %1988 = vmatpush.bf16.msra.mxu0 %v1922
  %1989 = vmatpush.bf16.msra.mxu0 %v1918
  %1990 = vmatmul.bf16.gmra.mxu0 %v1786
  %v1991 = vpop.f32.mrf.mxu0
  %v1992 = vadd.f32 0.0, %v1991
  %v1993 = vpop.f32.mrf.mxu0
  %v1994 = vadd.f32 0.0, %v1993
  %1995 = vmatmul.bf16.gmra.mxu0 %v1787
  %v1996 = vpop.f32.mrf.mxu0
  %v1997 = vadd.f32 0.0, %v1996
  %v1998 = vpop.f32.mrf.mxu0
  %v1999 = vadd.f32 0.0, %v1998
  %2000 = vmatmul.bf16.gmra.mxu0 %v1788
  %v2001 = vpop.f32.mrf.mxu0
  %v2002 = vadd.f32 0.0, %v2001
  %v2003 = vpop.f32.mrf.mxu0
  %v2004 = vadd.f32 0.0, %v2003
  %2005 = vmatmul.bf16.gmra.mxu0 %v1789
  %v2006 = vpop.f32.mrf.mxu0
  %v2007 = vadd.f32 0.0, %v2006
  %v2008 = vpop.f32.mrf.mxu0
  %v2009 = vadd.f32 0.0, %v2008
  %2010 = vdwg.mxu0
  %2011 = vmatpush.bf16.msra.mxu0 %v1947
  %2012 = vmatpush.bf16.msra.mxu0 %v1943
  %2013 = vmatpush.bf16.msra.mxu0 %v1939
  %2014 = vmatpush.bf16.msra.mxu0 %v1935
  %2015 = vmatpush.bf16.msra.mxu0 %v1931
  %2016 = vmatpush.bf16.msra.mxu0 %v1927
  %2017 = vmatpush.bf16.msra.mxu0 %v1923
  %2018 = vmatpush.bf16.msra.mxu0 %v1919
  %2019 = vmatmul.bf16.gmra.mxu0 %v1786
  %v2020 = vpop.f32.mrf.mxu0
  %v2021 = vadd.f32 0.0, %v2020
  %v2022 = vpop.f32.mrf.mxu0
  %v2023 = vadd.f32 0.0, %v2022
  %2024 = vmatmul.bf16.gmra.mxu0 %v1787
  %v2025 = vpop.f32.mrf.mxu0
  %v2026 = vadd.f32 0.0, %v2025
  %v2027 = vpop.f32.mrf.mxu0
  %v2028 = vadd.f32 0.0, %v2027
  %2029 = vmatmul.bf16.gmra.mxu0 %v1788
  %v2030 = vpop.f32.mrf.mxu0
  %v2031 = vadd.f32 0.0, %v2030
  %v2032 = vpop.f32.mrf.mxu0
  %v2033 = vadd.f32 0.0, %v2032
  %2034 = vmatmul.bf16.gmra.mxu0 %v1789
  %v2035 = vpop.f32.mrf.mxu0
  %v2036 = vadd.f32 0.0, %v2035
  %v2037 = vpop.f32.mrf.mxu0
  %v2038 = vadd.f32 0.0, %v2037
  %2039 = vdwg.mxu0
  %2040 = vmatpush.bf16.msra.mxu0 %v1948
  %2041 = vmatpush.bf16.msra.mxu0 %v1944
  %2042 = vmatpush.bf16.msra.mxu0 %v1940
  %2043 = vmatpush.bf16.msra.mxu0 %v1936
  %2044 = vmatpush.bf16.msra.mxu0 %v1932
  %2045 = vmatpush.bf16.msra.mxu0 %v1928
  %2046 = vmatpush.bf16.msra.mxu0 %v1924
  %2047 = vmatpush.bf16.msra.mxu0 %v1920
  %2048 = vmatmul.bf16.gmra.mxu0 %v1786
  %v2049 = vpop.f32.mrf.mxu0
  %v2050 = vadd.f32 0.0, %v2049
  %v2051 = vpop.f32.mrf.mxu0
  %v2052 = vadd.f32 0.0, %v2051
  %2053 = vmatmul.bf16.gmra.mxu0 %v1787
  %v2054 = vpop.f32.mrf.mxu0
  %v2055 = vadd.f32 0.0, %v2054
  %v2056 = vpop.f32.mrf.mxu0
  %v2057 = vadd.f32 0.0, %v2056
  %2058 = vmatmul.bf16.gmra.mxu0 %v1788
  %v2059 = vpop.f32.mrf.mxu0
  %v2060 = vadd.f32 0.0, %v2059
  %v2061 = vpop.f32.mrf.mxu0
  %v2062 = vadd.f32 0.0, %v2061
  %2063 = vmatmul.bf16.gmra.mxu0 %v1789
  %v2064 = vpop.f32.mrf.mxu0
  %v2065 = vadd.f32 0.0, %v2064
  %v2066 = vpop.f32.mrf.mxu0
  %v2067 = vadd.f32 0.0, %v2066
  %2068 = vdwg.mxu0
  %2069 = vmatpush.bf16.msra.mxu0 %v1949
  %2070 = vmatpush.bf16.msra.mxu0 %v1945
  %2071 = vmatpush.bf16.msra.mxu0 %v1941
  %2072 = vmatpush.bf16.msra.mxu0 %v1937
  %2073 = vmatpush.bf16.msra.mxu0 %v1933
  %2074 = vmatpush.bf16.msra.mxu0 %v1929
  %2075 = vmatpush.bf16.msra.mxu0 %v1925
  %2076 = vmatpush.bf16.msra.mxu0 %v1921
  %2077 = vmatmul.bf16.gmra.mxu0 %v1786
  %v2078 = vpop.f32.mrf.mxu0
  %v2079 = vadd.f32 0.0, %v2078
  %v2080 = vpop.f32.mrf.mxu0
  %v2081 = vadd.f32 0.0, %v2080
  %2082 = vmatmul.bf16.gmra.mxu0 %v1787
  %v2083 = vpop.f32.mrf.mxu0
  %v2084 = vadd.f32 0.0, %v2083
  %v2085 = vpop.f32.mrf.mxu0
  %v2086 = vadd.f32 0.0, %v2085
  %2087 = vmatmul.bf16.gmra.mxu0 %v1788
  %v2088 = vpop.f32.mrf.mxu0
  %v2089 = vadd.f32 0.0, %v2088
  %v2090 = vpop.f32.mrf.mxu0
  %v2091 = vadd.f32 0.0, %v2090
  %2092 = vmatmul.bf16.gmra.mxu0 %v1789
  %v2093 = vpop.f32.mrf.mxu0
  %v2094 = vadd.f32 0.0, %v2093
  %v2095 = vpop.f32.mrf.mxu0
  %v2096 = vadd.f32 0.0, %v2095
  %2097 = vdwg.mxu0
  %v2098 = vxor.u32 %v1992, 2147483648
  %v2099 = vxor.u32 %v2021, 2147483648
  %v2100 = vxor.u32 %v1994, 2147483648
  %v2101 = vxor.u32 %v2023, 2147483648
  %v2102 = vxor.u32 %v1997, 2147483648
  %v2103 = vxor.u32 %v2026, 2147483648
  %v2104 = vxor.u32 %v1999, 2147483648
  %v2105 = vxor.u32 %v2028, 2147483648
  %v2106 = vxor.u32 %v2002, 2147483648
  %v2107 = vxor.u32 %v2031, 2147483648
  %v2108 = vxor.u32 %v2004, 2147483648
  %v2109 = vxor.u32 %v2033, 2147483648
  %v2110 = vxor.u32 %v2007, 2147483648
  %v2111 = vxor.u32 %v2036, 2147483648
  %v2112 = vxor.u32 %v2009, 2147483648
  %v2113 = vxor.u32 %v2038, 2147483648
  %v2114 = vmul.f32 %v2098, 1.442695
  %v2115 = vpow.pop %v2114
  %v2116 = vmul.f32 %v2099, 1.442695
  %v2117 = vpow.pop %v2116
  %v2118 = vmul.f32 %v2100, 1.442695
  %v2119 = vpow.pop %v2118
  %v2120 = vmul.f32 %v2101, 1.442695
  %v2121 = vpow.pop %v2120
  %v2122 = vmul.f32 %v2102, 1.442695
  %v2123 = vpow.pop %v2122
  %v2124 = vmul.f32 %v2103, 1.442695
  %v2125 = vpow.pop %v2124
  %v2126 = vmul.f32 %v2104, 1.442695
  %v2127 = vpow.pop %v2126
  %v2128 = vmul.f32 %v2105, 1.442695
  %v2129 = vpow.pop %v2128
  %v2130 = vmul.f32 %v2106, 1.442695
  %v2131 = vpow.pop %v2130
  %v2132 = vmul.f32 %v2107, 1.442695
  %v2133 = vpow.pop %v2132
  %v2134 = vmul.f32 %v2108, 1.442695
  %v2135 = vpow.pop %v2134
  %v2136 = vmul.f32 %v2109, 1.442695
  %v2137 = vpow.pop %v2136
  %v2138 = vmul.f32 %v2110, 1.442695
  %v2139 = vpow.pop %v2138
  %v2140 = vmul.f32 %v2111, 1.442695
  %v2141 = vpow.pop %v2140
  %v2142 = vmul.f32 %v2112, 1.442695
  %v2143 = vpow.pop %v2142
  %v2144 = vmul.f32 %v2113, 1.442695
  %v2145 = vpow.pop %v2144
  %v2146 = vadd.f32 %v2115, 1.0
  %v2147 = vadd.f32 %v2117, 1.0
  %v2148 = vadd.f32 %v2119, 1.0
  %v2149 = vadd.f32 %v2121, 1.0
  %v2150 = vadd.f32 %v2123, 1.0
  %v2151 = vadd.f32 %v2125, 1.0
  %v2152 = vadd.f32 %v2127, 1.0
  %v2153 = vadd.f32 %v2129, 1.0
  %v2154 = vadd.f32 %v2131, 1.0
  %v2155 = vadd.f32 %v2133, 1.0
  %v2156 = vadd.f32 %v2135, 1.0
  %v2157 = vadd.f32 %v2137, 1.0
  %v2158 = vadd.f32 %v2139, 1.0
  %v2159 = vadd.f32 %v2141, 1.0
  %v2160 = vadd.f32 %v2143, 1.0
  %v2161 = vadd.f32 %v2145, 1.0
  %v2162 = vrcp.pop %v2146
  %v2163 = vmul.f32 %v2146, %v2162
  %v2164 = vsub.f32 1.0, %v2163
  %v2165 = vmul.f32 %v2162, %v2164
  %v2166 = vadd.f32 %v2162, %v2165
  %vm2167 = vweird.f32 %v2146
  %vm2168 = vweird.f32 %v2162
  %vm2169 = vmor %vm2167, %vm2168
  %v2170 = vsel %vm2169, %v2162, %v2166
  %v2171 = vand.u32 2147483647, %v2146
  %vm2172 = vcmp.eq.f32.partialorder %v2171, 8.507059e+37
  %v2173 = vand.u32 %v2146, 2147483648
  %v2174 = vor.u32 1.1754944e-38, %v2173
  %v2175 = vsel %vm2172, %v2174, %v2170
  %v2176 = vmul.f32 1.0, %v2175
  %v2177 = vrcp.pop %v2147
  %v2178 = vmul.f32 %v2147, %v2177
  %v2179 = vsub.f32 1.0, %v2178
  %v2180 = vmul.f32 %v2177, %v2179
  %v2181 = vadd.f32 %v2177, %v2180
  %vm2182 = vweird.f32 %v2147
  %vm2183 = vweird.f32 %v2177
  %vm2184 = vmor %vm2182, %vm2183
  %v2185 = vsel %vm2184, %v2177, %v2181
  %v2186 = vand.u32 2147483647, %v2147
  %vm2187 = vcmp.eq.f32.partialorder %v2186, 8.507059e+37
  %v2188 = vand.u32 %v2147, 2147483648
  %v2189 = vor.u32 1.1754944e-38, %v2188
  %v2190 = vsel %vm2187, %v2189, %v2185
  %v2191 = vmul.f32 1.0, %v2190
  %v2192 = vrcp.pop %v2148
  %v2193 = vmul.f32 %v2148, %v2192
  %v2194 = vsub.f32 1.0, %v2193
  %v2195 = vmul.f32 %v2192, %v2194
  %v2196 = vadd.f32 %v2192, %v2195
  %vm2197 = vweird.f32 %v2148
  %vm2198 = vweird.f32 %v2192
  %vm2199 = vmor %vm2197, %vm2198
  %v2200 = vsel %vm2199, %v2192, %v2196
  %v2201 = vand.u32 2147483647, %v2148
  %vm2202 = vcmp.eq.f32.partialorder %v2201, 8.507059e+37
  %v2203 = vand.u32 %v2148, 2147483648
  %v2204 = vor.u32 1.1754944e-38, %v2203
  %v2205 = vsel %vm2202, %v2204, %v2200
  %v2206 = vmul.f32 1.0, %v2205
  %v2207 = vrcp.pop %v2149
  %v2208 = vmul.f32 %v2149, %v2207
  %v2209 = vsub.f32 1.0, %v2208
  %v2210 = vmul.f32 %v2207, %v2209
  %v2211 = vadd.f32 %v2207, %v2210
  %vm2212 = vweird.f32 %v2149
  %vm2213 = vweird.f32 %v2207
  %vm2214 = vmor %vm2212, %vm2213
  %v2215 = vsel %vm2214, %v2207, %v2211
  %v2216 = vand.u32 2147483647, %v2149
  %vm2217 = vcmp.eq.f32.partialorder %v2216, 8.507059e+37
  %v2218 = vand.u32 %v2149, 2147483648
  %v2219 = vor.u32 1.1754944e-38, %v2218
  %v2220 = vsel %vm2217, %v2219, %v2215
  %v2221 = vmul.f32 1.0, %v2220
  %v2222 = vrcp.pop %v2150
  %v2223 = vmul.f32 %v2150, %v2222
  %v2224 = vsub.f32 1.0, %v2223
  %v2225 = vmul.f32 %v2222, %v2224
  %v2226 = vadd.f32 %v2222, %v2225
  %vm2227 = vweird.f32 %v2150
  %vm2228 = vweird.f32 %v2222
  %vm2229 = vmor %vm2227, %vm2228
  %v2230 = vsel %vm2229, %v2222, %v2226
  %v2231 = vand.u32 2147483647, %v2150
  %vm2232 = vcmp.eq.f32.partialorder %v2231, 8.507059e+37
  %v2233 = vand.u32 %v2150, 2147483648
  %v2234 = vor.u32 1.1754944e-38, %v2233
  %v2235 = vsel %vm2232, %v2234, %v2230
  %v2236 = vmul.f32 1.0, %v2235
  %v2237 = vrcp.pop %v2151
  %v2238 = vmul.f32 %v2151, %v2237
  %v2239 = vsub.f32 1.0, %v2238
  %v2240 = vmul.f32 %v2237, %v2239
  %v2241 = vadd.f32 %v2237, %v2240
  %vm2242 = vweird.f32 %v2151
  %vm2243 = vweird.f32 %v2237
  %vm2244 = vmor %vm2242, %vm2243
  %v2245 = vsel %vm2244, %v2237, %v2241
  %v2246 = vand.u32 2147483647, %v2151
  %vm2247 = vcmp.eq.f32.partialorder %v2246, 8.507059e+37
  %v2248 = vand.u32 %v2151, 2147483648
  %v2249 = vor.u32 1.1754944e-38, %v2248
  %v2250 = vsel %vm2247, %v2249, %v2245
  %v2251 = vmul.f32 1.0, %v2250
  %v2252 = vrcp.pop %v2152
  %v2253 = vmul.f32 %v2152, %v2252
  %v2254 = vsub.f32 1.0, %v2253
  %v2255 = vmul.f32 %v2252, %v2254
  %v2256 = vadd.f32 %v2252, %v2255
  %vm2257 = vweird.f32 %v2152
  %vm2258 = vweird.f32 %v2252
  %vm2259 = vmor %vm2257, %vm2258
  %v2260 = vsel %vm2259, %v2252, %v2256
  %v2261 = vand.u32 2147483647, %v2152
  %vm2262 = vcmp.eq.f32.partialorder %v2261, 8.507059e+37
  %v2263 = vand.u32 %v2152, 2147483648
  %v2264 = vor.u32 1.1754944e-38, %v2263
  %v2265 = vsel %vm2262, %v2264, %v2260
  %v2266 = vmul.f32 1.0, %v2265
  %v2267 = vrcp.pop %v2153
  %v2268 = vmul.f32 %v2153, %v2267
  %v2269 = vsub.f32 1.0, %v2268
  %v2270 = vmul.f32 %v2267, %v2269
  %v2271 = vadd.f32 %v2267, %v2270
  %vm2272 = vweird.f32 %v2153
  %vm2273 = vweird.f32 %v2267
  %vm2274 = vmor %vm2272, %vm2273
  %v2275 = vsel %vm2274, %v2267, %v2271
  %v2276 = vand.u32 2147483647, %v2153
  %vm2277 = vcmp.eq.f32.partialorder %v2276, 8.507059e+37
  %v2278 = vand.u32 %v2153, 2147483648
  %v2279 = vor.u32 1.1754944e-38, %v2278
  %v2280 = vsel %vm2277, %v2279, %v2275
  %v2281 = vmul.f32 1.0, %v2280
  %v2282 = vrcp.pop %v2154
  %v2283 = vmul.f32 %v2154, %v2282
  %v2284 = vsub.f32 1.0, %v2283
  %v2285 = vmul.f32 %v2282, %v2284
  %v2286 = vadd.f32 %v2282, %v2285
  %vm2287 = vweird.f32 %v2154
  %vm2288 = vweird.f32 %v2282
  %vm2289 = vmor %vm2287, %vm2288
  %v2290 = vsel %vm2289, %v2282, %v2286
  %v2291 = vand.u32 2147483647, %v2154
  %vm2292 = vcmp.eq.f32.partialorder %v2291, 8.507059e+37
  %v2293 = vand.u32 %v2154, 2147483648
  %v2294 = vor.u32 1.1754944e-38, %v2293
  %v2295 = vsel %vm2292, %v2294, %v2290
  %v2296 = vmul.f32 1.0, %v2295
  %v2297 = vrcp.pop %v2155
  %v2298 = vmul.f32 %v2155, %v2297
  %v2299 = vsub.f32 1.0, %v2298
  %v2300 = vmul.f32 %v2297, %v2299
  %v2301 = vadd.f32 %v2297, %v2300
  %vm2302 = vweird.f32 %v2155
  %vm2303 = vweird.f32 %v2297
  %vm2304 = vmor %vm2302, %vm2303
  %v2305 = vsel %vm2304, %v2297, %v2301
  %v2306 = vand.u32 2147483647, %v2155
  %vm2307 = vcmp.eq.f32.partialorder %v2306, 8.507059e+37
  %v2308 = vand.u32 %v2155, 2147483648
  %v2309 = vor.u32 1.1754944e-38, %v2308
  %v2310 = vsel %vm2307, %v2309, %v2305
  %v2311 = vmul.f32 1.0, %v2310
  %v2312 = vrcp.pop %v2156
  %v2313 = vmul.f32 %v2156, %v2312
  %v2314 = vsub.f32 1.0, %v2313
  %v2315 = vmul.f32 %v2312, %v2314
  %v2316 = vadd.f32 %v2312, %v2315
  %vm2317 = vweird.f32 %v2156
  %vm2318 = vweird.f32 %v2312
  %vm2319 = vmor %vm2317, %vm2318
  %v2320 = vsel %vm2319, %v2312, %v2316
  %v2321 = vand.u32 2147483647, %v2156
  %vm2322 = vcmp.eq.f32.partialorder %v2321, 8.507059e+37
  %v2323 = vand.u32 %v2156, 2147483648
  %v2324 = vor.u32 1.1754944e-38, %v2323
  %v2325 = vsel %vm2322, %v2324, %v2320
  %v2326 = vmul.f32 1.0, %v2325
  %v2327 = vrcp.pop %v2157
  %v2328 = vmul.f32 %v2157, %v2327
  %v2329 = vsub.f32 1.0, %v2328
  %v2330 = vmul.f32 %v2327, %v2329
  %v2331 = vadd.f32 %v2327, %v2330
  %vm2332 = vweird.f32 %v2157
  %vm2333 = vweird.f32 %v2327
  %vm2334 = vmor %vm2332, %vm2333
  %v2335 = vsel %vm2334, %v2327, %v2331
  %v2336 = vand.u32 2147483647, %v2157
  %vm2337 = vcmp.eq.f32.partialorder %v2336, 8.507059e+37
  %v2338 = vand.u32 %v2157, 2147483648
  %v2339 = vor.u32 1.1754944e-38, %v2338
  %v2340 = vsel %vm2337, %v2339, %v2335
  %v2341 = vmul.f32 1.0, %v2340
  %v2342 = vrcp.pop %v2158
  %v2343 = vmul.f32 %v2158, %v2342
  %v2344 = vsub.f32 1.0, %v2343
  %v2345 = vmul.f32 %v2342, %v2344
  %v2346 = vadd.f32 %v2342, %v2345
  %vm2347 = vweird.f32 %v2158
  %vm2348 = vweird.f32 %v2342
  %vm2349 = vmor %vm2347, %vm2348
  %v2350 = vsel %vm2349, %v2342, %v2346
  %v2351 = vand.u32 2147483647, %v2158
  %vm2352 = vcmp.eq.f32.partialorder %v2351, 8.507059e+37
  %v2353 = vand.u32 %v2158, 2147483648
  %v2354 = vor.u32 1.1754944e-38, %v2353
  %v2355 = vsel %vm2352, %v2354, %v2350
  %v2356 = vmul.f32 1.0, %v2355
  %v2357 = vrcp.pop %v2159
  %v2358 = vmul.f32 %v2159, %v2357
  %v2359 = vsub.f32 1.0, %v2358
  %v2360 = vmul.f32 %v2357, %v2359
  %v2361 = vadd.f32 %v2357, %v2360
  %vm2362 = vweird.f32 %v2159
  %vm2363 = vweird.f32 %v2357
  %vm2364 = vmor %vm2362, %vm2363
  %v2365 = vsel %vm2364, %v2357, %v2361
  %v2366 = vand.u32 2147483647, %v2159
  %vm2367 = vcmp.eq.f32.partialorder %v2366, 8.507059e+37
  %v2368 = vand.u32 %v2159, 2147483648
  %v2369 = vor.u32 1.1754944e-38, %v2368
  %v2370 = vsel %vm2367, %v2369, %v2365
  %v2371 = vmul.f32 1.0, %v2370
  %v2372 = vrcp.pop %v2160
  %v2373 = vmul.f32 %v2160, %v2372
  %v2374 = vsub.f32 1.0, %v2373
  %v2375 = vmul.f32 %v2372, %v2374
  %v2376 = vadd.f32 %v2372, %v2375
  %vm2377 = vweird.f32 %v2160
  %vm2378 = vweird.f32 %v2372
  %vm2379 = vmor %vm2377, %vm2378
  %v2380 = vsel %vm2379, %v2372, %v2376
  %v2381 = vand.u32 2147483647, %v2160
  %vm2382 = vcmp.eq.f32.partialorder %v2381, 8.507059e+37
  %v2383 = vand.u32 %v2160, 2147483648
  %v2384 = vor.u32 1.1754944e-38, %v2383
  %v2385 = vsel %vm2382, %v2384, %v2380
  %v2386 = vmul.f32 1.0, %v2385
  %v2387 = vrcp.pop %v2161
  %v2388 = vmul.f32 %v2161, %v2387
  %v2389 = vsub.f32 1.0, %v2388
  %v2390 = vmul.f32 %v2387, %v2389
  %v2391 = vadd.f32 %v2387, %v2390
  %vm2392 = vweird.f32 %v2161
  %vm2393 = vweird.f32 %v2387
  %vm2394 = vmor %vm2392, %vm2393
  %v2395 = vsel %vm2394, %v2387, %v2391
  %v2396 = vand.u32 2147483647, %v2161
  %vm2397 = vcmp.eq.f32.partialorder %v2396, 8.507059e+37
  %v2398 = vand.u32 %v2161, 2147483648
  %v2399 = vor.u32 1.1754944e-38, %v2398
  %v2400 = vsel %vm2397, %v2399, %v2395
  %v2401 = vmul.f32 1.0, %v2400
  %v2402 = vmul.f32 %v1992, %v2176
  %v2403 = vmul.f32 %v2021, %v2191
  %v2404 = vmul.f32 %v1994, %v2206
  %v2405 = vmul.f32 %v2023, %v2221
  %v2406 = vmul.f32 %v1997, %v2236
  %v2407 = vmul.f32 %v2026, %v2251
  %v2408 = vmul.f32 %v1999, %v2266
  %v2409 = vmul.f32 %v2028, %v2281
  %v2410 = vmul.f32 %v2002, %v2296
  %v2411 = vmul.f32 %v2031, %v2311
  %v2412 = vmul.f32 %v2004, %v2326
  %v2413 = vmul.f32 %v2033, %v2341
  %v2414 = vmul.f32 %v2007, %v2356
  %v2415 = vmul.f32 %v2036, %v2371
  %v2416 = vmul.f32 %v2009, %v2386
  %v2417 = vmul.f32 %v2038, %v2401
  %v2418 = vmul.f32 %v2402, %v2050
  %v2419 = vmul.f32 %v2403, %v2079
  %v2420 = vmul.f32 %v2404, %v2052
  %v2421 = vmul.f32 %v2405, %v2081
  %v2422 = vmul.f32 %v2406, %v2055
  %v2423 = vmul.f32 %v2407, %v2084
  %v2424 = vmul.f32 %v2408, %v2057
  %v2425 = vmul.f32 %v2409, %v2086
  %v2426 = vmul.f32 %v2410, %v2060
  %v2427 = vmul.f32 %v2411, %v2089
  %v2428 = vmul.f32 %v2412, %v2062
  %v2429 = vmul.f32 %v2413, %v2091
  %v2430 = vmul.f32 %v2414, %v2065
  %v2431 = vmul.f32 %v2415, %v2094
  %v2432 = vmul.f32 %v2416, %v2067
  %v2433 = vmul.f32 %v2417, %v2096
  %v2434 = vpack.c.bf16 %v2420, %v2418
  %v2435 = vpack.c.bf16 %v2421, %v2419
  %v2436 = vpack.c.bf16 %v2424, %v2422
  %v2437 = vpack.c.bf16 %v2425, %v2423
  %v2438 = vpack.c.bf16 %v2428, %v2426
  %v2439 = vpack.c.bf16 %v2429, %v2427
  %v2440 = vpack.c.bf16 %v2432, %v2430
  %v2441 = vpack.c.bf16 %v2433, %v2431
  %v2442 = vld [vmem:[%s6] sm:$0xf]
  %v2443 = vld [vmem:[%s6 + $0x4] sm:$0xf]
  %v2444 = vld [vmem:[%s6 + $0x8] sm:$0xf]
  %v2445 = vld [vmem:[%s6 + $0xc] sm:$0xf]
  %v2446 = vld [vmem:[%s6 + $0x10] sm:$0xf]
  %v2447 = vld [vmem:[%s6 + $0x14] sm:$0xf]
  %v2448 = vld [vmem:[%s6 + $0x18] sm:$0xf]
  %v2449 = vld [vmem:[%s6 + $0x1c] sm:$0xf]
  %v2450 = vld [vmem:[%s6 + $0x20] sm:$0xf]
  %v2451 = vld [vmem:[%s6 + $0x24] sm:$0xf]
  %v2452 = vld [vmem:[%s6 + $0x28] sm:$0xf]
  %v2453 = vld [vmem:[%s6 + $0x2c] sm:$0xf]
  %v2454 = vld [vmem:[%s6 + $0x30] sm:$0xf]
  %v2455 = vld [vmem:[%s6 + $0x34] sm:$0xf]
  %v2456 = vld [vmem:[%s6 + $0x38] sm:$0xf]
  %v2457 = vld [vmem:[%s6 + $0x3c] sm:$0xf]
  %v2458 = vld [vmem:[%s6 + $0x40] sm:$0xf]
  %v2459 = vld [vmem:[%s6 + $0x44] sm:$0xf]
  %v2460 = vld [vmem:[%s6 + $0x48] sm:$0xf]
  %v2461 = vld [vmem:[%s6 + $0x4c] sm:$0xf]
  %v2462 = vld [vmem:[%s6 + $0x50] sm:$0xf]
  %v2463 = vld [vmem:[%s6 + $0x54] sm:$0xf]
  %v2464 = vld [vmem:[%s6 + $0x58] sm:$0xf]
  %v2465 = vld [vmem:[%s6 + $0x5c] sm:$0xf]
  %v2466 = vld [vmem:[%s6 + $0x60] sm:$0xf]
  %v2467 = vld [vmem:[%s6 + $0x64] sm:$0xf]
  %v2468 = vld [vmem:[%s6 + $0x68] sm:$0xf]
  %v2469 = vld [vmem:[%s6 + $0x6c] sm:$0xf]
  %v2470 = vld [vmem:[%s6 + $0x70] sm:$0xf]
  %v2471 = vld [vmem:[%s6 + $0x74] sm:$0xf]
  %v2472 = vld [vmem:[%s6 + $0x78] sm:$0xf]
  %v2473 = vld [vmem:[%s6 + $0x7c] sm:$0xf]
  %v2506 = vunpack.c.l.b16 %v2442
  %v2507 = vunpack.c.l.b16 %v2443
  %v2508 = vunpack.c.l.b16 %v2444
  %v2509 = vunpack.c.l.b16 %v2445
  %v2510 = vunpack.c.l.b16 %v2446
  %v2511 = vunpack.c.l.b16 %v2447
  %v2512 = vunpack.c.l.b16 %v2448
  %v2513 = vunpack.c.l.b16 %v2449
  %v2514 = vunpack.c.l.b16 %v2450
  %v2515 = vunpack.c.l.b16 %v2451
  %v2516 = vunpack.c.l.b16 %v2452
  %v2517 = vunpack.c.l.b16 %v2453
  %v2518 = vunpack.c.l.b16 %v2454
  %v2519 = vunpack.c.l.b16 %v2455
  %v2520 = vunpack.c.l.b16 %v2456
  %v2521 = vunpack.c.l.b16 %v2457
  %v2522 = vunpack.c.l.b16 %v2458
  %v2523 = vunpack.c.l.b16 %v2459
  %v2524 = vunpack.c.l.b16 %v2460
  %v2525 = vunpack.c.l.b16 %v2461
  %v2526 = vunpack.c.l.b16 %v2462
  %v2527 = vunpack.c.l.b16 %v2463
  %v2528 = vunpack.c.l.b16 %v2464
  %v2529 = vunpack.c.l.b16 %v2465
  %v2530 = vunpack.c.l.b16 %v2466
  %v2531 = vunpack.c.l.b16 %v2467
  %v2532 = vunpack.c.l.b16 %v2468
  %v2533 = vunpack.c.l.b16 %v2469
  %v2534 = vunpack.c.l.b16 %v2470
  %v2535 = vunpack.c.l.b16 %v2471
  %v2536 = vunpack.c.l.b16 %v2472
  %v2537 = vunpack.c.l.b16 %v2473
  %v2538 = vpack.c.b16 %v2507, %v2506
  %v2539 = vpack.c.b16 %v2509, %v2508
  %v2540 = vpack.c.b16 %v2511, %v2510
  %v2541 = vpack.c.b16 %v2513, %v2512
  %v2542 = vpack.c.b16 %v2515, %v2514
  %v2543 = vpack.c.b16 %v2517, %v2516
  %v2544 = vpack.c.b16 %v2519, %v2518
  %v2545 = vpack.c.b16 %v2521, %v2520
  %v2546 = vpack.c.b16 %v2523, %v2522
  %v2547 = vpack.c.b16 %v2525, %v2524
  %v2548 = vpack.c.b16 %v2527, %v2526
  %v2549 = vpack.c.b16 %v2529, %v2528
  %v2550 = vpack.c.b16 %v2531, %v2530
  %v2551 = vpack.c.b16 %v2533, %v2532
  %v2552 = vpack.c.b16 %v2535, %v2534
  %v2553 = vpack.c.b16 %v2537, %v2536
  %2570 = vmatpush.bf16.msra.mxu0 %v2545
  %2571 = vmatpush.bf16.msra.mxu0 %v2544
  %2572 = vmatpush.bf16.msra.mxu0 %v2543
  %2573 = vmatpush.bf16.msra.mxu0 %v2542
  %2574 = vmatpush.bf16.msra.mxu0 %v2541
  %2575 = vmatpush.bf16.msra.mxu0 %v2540
  %2576 = vmatpush.bf16.msra.mxu0 %v2539
  %2577 = vmatpush.bf16.msra.mxu0 %v2538
  %2578 = vmatmul.bf16.gmra.mxu0 %v2434
  %v2579 = vpop.f32.mrf.mxu0
  %v2580 = vadd.f32 0.0, %v2579
  %v2581 = vpop.f32.mrf.mxu0
  %v2582 = vadd.f32 0.0, %v2581
  %2583 = vmatmul.bf16.gmra.mxu0 %v2436
  %v2584 = vpop.f32.mrf.mxu0
  %v2585 = vadd.f32 0.0, %v2584
  %v2586 = vpop.f32.mrf.mxu0
  %v2587 = vadd.f32 0.0, %v2586
  %2588 = vmatmul.bf16.gmra.mxu0 %v2438
  %v2589 = vpop.f32.mrf.mxu0
  %v2590 = vadd.f32 0.0, %v2589
  %v2591 = vpop.f32.mrf.mxu0
  %v2592 = vadd.f32 0.0, %v2591
  %2593 = vmatmul.bf16.gmra.mxu0 %v2440
  %v2594 = vpop.f32.mrf.mxu0
  %v2595 = vadd.f32 0.0, %v2594
  %v2596 = vpop.f32.mrf.mxu0
  %v2597 = vadd.f32 0.0, %v2596
  %2598 = vdwg.mxu0
  %2599 = vmatpush.bf16.msra.mxu0 %v2553
  %2600 = vmatpush.bf16.msra.mxu0 %v2552
  %2601 = vmatpush.bf16.msra.mxu0 %v2551
  %2602 = vmatpush.bf16.msra.mxu0 %v2550
  %2603 = vmatpush.bf16.msra.mxu0 %v2549
  %2604 = vmatpush.bf16.msra.mxu0 %v2548
  %2605 = vmatpush.bf16.msra.mxu0 %v2547
  %2606 = vmatpush.bf16.msra.mxu0 %v2546
  %2607 = vmatmul.bf16.gmra.mxu0 %v2435
  %v2608 = vpop.f32.mrf.mxu0
  %v2609 = vadd.f32 %v2580, %v2608
  %v2610 = vpop.f32.mrf.mxu0
  %v2611 = vadd.f32 %v2582, %v2610
  %2612 = vmatmul.bf16.gmra.mxu0 %v2437
  %v2613 = vpop.f32.mrf.mxu0
  %v2614 = vadd.f32 %v2585, %v2613
  %v2615 = vpop.f32.mrf.mxu0
  %v2616 = vadd.f32 %v2587, %v2615
  %2617 = vmatmul.bf16.gmra.mxu0 %v2439
  %v2618 = vpop.f32.mrf.mxu0
  %v2619 = vadd.f32 %v2590, %v2618
  %v2620 = vpop.f32.mrf.mxu0
  %v2621 = vadd.f32 %v2592, %v2620
  %2622 = vmatmul.bf16.gmra.mxu0 %v2441
  %v2623 = vpop.f32.mrf.mxu0
  %v2624 = vadd.f32 %v2595, %v2623
  %v2625 = vpop.f32.mrf.mxu0
  %v2626 = vadd.f32 %v2597, %v2625
  %2627 = vdwg.mxu0
  %v2628 = vadd.f32 %v1638, %v2609
  %v2629 = vadd.f32 %v1639, %v2611
  %v2630 = vadd.f32 %v1640, %v2614
  %v2631 = vadd.f32 %v1641, %v2616
  %v2632 = vadd.f32 %v1642, %v2619
  %v2633 = vadd.f32 %v1643, %v2621
  %v2634 = vadd.f32 %v1644, %v2624
  %v2635 = vadd.f32 %v1645, %v2626
  %2636 = vst [vmem:[%s9] sm:$0xff] %v2628
  %2637 = vst [vmem:[%s9 + $0x8] sm:$0xff] %v2629
  %2638 = vst [vmem:[%s9 + $0x10] sm:$0xff] %v2630
  %2639 = vst [vmem:[%s9 + $0x18] sm:$0xff] %v2631
  %2640 = vst [vmem:[%s9 + $0x20] sm:$0xff] %v2632
  %2641 = vst [vmem:[%s9 + $0x28] sm:$0xff] %v2633
  %2642 = vst [vmem:[%s9 + $0x30] sm:$0xff] %v2634
  %2643 = vst [vmem:[%s9 + $0x38] sm:$0xff] %v2635
  // Predicated region
  $region38: #{llama_decoder_forward.3} parent=0 // pred_check
    _
  $region39: #{llama_decoder_forward.3} parent=0 // pred_check_branch
    %2645 = sbr.rel (0) target = $region41
  $region40: #{llama_decoder_forward.3} parent=0 // pred_region
    _
  $region41: #{llama_decoder_forward.3} parent=0 // pred_fallthru
    _
  // Predicated region
  $region42: #{llama_decoder_forward.3} parent=0 // pred_check
    _
  $region43: #{llama_decoder_forward.3} parent=0 // pred_check_branch
    %2647 = sbr.rel (0) target = $region45
  $region44: #{llama_decoder_forward.3} parent=0 // pred_region
    _
  $region45: #{llama_decoder_forward.3} parent=0 // pred_fallthru
    _

</llo_original>
